<compile_context>
chip_gen: v7x
topology: tpu7x:2x2x1
jax: 0.10.0
libtpu: 0.0.40
codegen_flags: <defaults>
</compile_context>

<pallas_src>
import math
import functools

import jax
import jax.numpy as jnp
from jax import lax
from jax.experimental import pallas as pl
from jax.experimental.pallas import tpu as pltpu


def _gram_kernel(x_ref, wm_ref, bm_ref, g_ref, acc_ref, *,
                 tile_m, n_valid, mask_rows):
    """Stage 1: accumulate G = h.T @ h over row tiles of the input."""
    i = pl.program_id(0)

    @pl.when(i == 0)
    def _():
        acc_ref[...] = jnp.zeros_like(acc_ref)

    # h = x @ Wm + bm   (bf16 MXU operands, f32 accumulation, f32 bias add)
    h = jnp.dot(x_ref[...], wm_ref[...], preferred_element_type=jnp.float32)
    h = h + bm_ref[...]

    if mask_rows:
        # Zero out rows that are zero-padding of the node dimension (they would
        # otherwise contribute bm.T @ bm to the Gram matrix).
        row = i * tile_m + lax.broadcasted_iota(jnp.int32, (tile_m, 1), 0)
        h = jnp.where(row < n_valid, h, 0.0)

    h_bf = h.astype(jnp.bfloat16)

    # G += h.T @ h written as a transposed contraction (contract dim 0 of both
    # operands) so no explicit XLU transpose / transposed VMEM copy is needed.
    acc_ref[...] += lax.dot_general(
        h_bf, h_bf,
        dimension_numbers=(((0,), (0,)), ((), ())),
        preferred_element_type=jnp.float32)

    @pl.when(i == pl.num_programs(0) - 1)
    def _():
        g_ref[...] = acc_ref[...]          # stays f32 between the stages


def _out_kernel(x_ref, wm_ref, bm_ref, t_ref, b_ref, o_ref):
    """Stage 2: out_tile = log_softmax(h @ T + b) for one row tile."""
    # Recompute h for this tile (cheaper than an HBM round trip of h).
    h = jnp.dot(x_ref[...], wm_ref[...], preferred_element_type=jnp.float32)
    h = h + bm_ref[...]

    out = jnp.dot(h, t_ref[...], preferred_element_type=jnp.float32)
    out = out + b_ref[...]                 # padded lanes carry a -1e30 bias

    # log_softmax over dim 1, all in f32.  Padded lanes sit at ~-1e30: they
    # never win the max and exp() underflows to exactly 0, so the lse over the
    # real out_features columns is unaffected.  (Relies on real logits staying
    # far below 1e30 and on the wrapper slicing the pad columns off.)
    m = jnp.max(out, axis=1, keepdims=True)
    shifted = out - m
    lse = jnp.log(jnp.sum(jnp.exp(shifted), axis=1, keepdims=True))
    o_ref[...] = (shifted - lse).astype(o_ref.dtype)


def _round_up(x, m):
    return ((x + m - 1) // m) * m


@functools.partial(jax.jit, static_argnames=("block_rows",))
def graphconv_forward(x, wm, bm, w1, w2, b, *, block_rows=512):
    n, fdim = x.shape
    in_f = wm.shape[1]
    out_f = w2.shape[1]
    out_pad = max(128, _round_up(out_f, 128))     # lane-dense output slab

    # Row tiling: whole array if it fits one tile, otherwise block_rows-row
    # tiles (block_rows should be a multiple of 256 for the v6e/v7x MXU) with a
    # zero-padded, masked ragged tail.
    if n <= block_rows:
        tile_m, n_pad = n, n
    else:
        tile_m = block_rows
        n_pad = _round_up(n, tile_m)
    mask_rows = n_pad != n
    grid = (n_pad // tile_m,)

    # bf16 operands feed the MXU at full rate and halve HBM bytes for the big
    # (n, fdim) stream; biases, G, T and the epilogue stay f32.
    xb = x.astype(jnp.bfloat16)
    if mask_rows:
        xb = jnp.zeros((n_pad, fdim), jnp.bfloat16).at[:n].set(xb)
    wmb = wm.astype(jnp.bfloat16)
    bm32 = bm.astype(jnp.float32).reshape(1, in_f)

    full = lambda i: (0, 0)
    cp_reduce = pltpu.CompilerParams(
        dimension_semantics=("arbitrary",),       # G accumulates over this axis
        vmem_limit_bytes=32 * 1024 * 1024)
    cp_parallel = pltpu.CompilerParams(
        dimension_semantics=("parallel",),        # row tiles split across TCs (v7x)
        vmem_limit_bytes=32 * 1024 * 1024)

    # ---- stage 1: G = h.T @ h, reduced over row tiles ----
    gram_kernel = functools.partial(
        _gram_kernel, tile_m=tile_m, n_valid=n, mask_rows=mask_rows)
    g = pl.pallas_call(
        gram_kernel,
        out_shape=jax.ShapeDtypeStruct((in_f, in_f), jnp.float32),
        grid=grid,
        in_specs=[
            pl.BlockSpec((tile_m, fdim), lambda i: (i, 0)),   # x row tile
            pl.BlockSpec((fdim, in_f), full),                 # Wm
            pl.BlockSpec((1, in_f), full),                    # bm
        ],
        out_specs=pl.BlockSpec((in_f, in_f), full),           # G (resident)
        scratch_shapes=[pltpu.VMEM((in_f, in_f), jnp.float32)],
        compiler_params=cp_reduce,
    )(xb, wmb, bm32)

    # ---- inter-stage: T = W1 @ G @ W2pad  (32 x out_pad, f32, negligible) ----
    hi = lax.Precision.HIGHEST
    w2p = jnp.zeros((in_f, out_pad), jnp.float32).at[:, :out_f].set(
        w2.astype(jnp.float32))
    t = jnp.dot(jnp.dot(w1.astype(jnp.float32), g, precision=hi), w2p,
                precision=hi)

    # Padded bias: -1e30 in pad lanes keeps them out of the log_softmax.
    bp = jnp.full((1, out_pad), -1e30, jnp.float32).at[:, :out_f].set(
        b.astype(jnp.float32).reshape(1, out_f))

    # ---- stage 2: out = log_softmax(h @ T + b), row tiles in parallel ----
    out_padded = pl.pallas_call(
        _out_kernel,
        out_shape=jax.ShapeDtypeStruct((n_pad, out_pad), jnp.float32),
        grid=grid,
        in_specs=[
            pl.BlockSpec((tile_m, fdim), lambda i: (i, 0)),   # x row tile
            pl.BlockSpec((fdim, in_f), full),                 # Wm
            pl.BlockSpec((1, in_f), full),                    # bm
            pl.BlockSpec((in_f, out_pad), full),              # T (f32)
            pl.BlockSpec((1, out_pad), full),                 # bias (padded)
        ],
        out_specs=pl.BlockSpec((tile_m, out_pad), lambda i: (i, 0)),
        compiler_params=cp_parallel,
    )(xb, wmb, bm32, t, bp)

    return out_padded[:n, :out_f]


def graphconv_reference(x, wm, bm, w1, w2, b):
    """Pure f32 reference with the original (PyTorch) association order."""
    hi = lax.Precision.HIGHEST
    f32 = jnp.float32
    x = x.astype(f32); wm = wm.astype(f32); w1 = w1.astype(f32); w2 = w2.astype(f32)
    h = jnp.dot(x, wm, precision=hi) + bm.astype(f32)
    n_mat = jnp.dot(jnp.dot(h, w1, precision=hi), h.T, precision=hi)
    # dropout(N, training=False) == identity
    middle = jnp.dot(h, w2, precision=hi)
    out = jnp.dot(n_mat, middle, precision=hi) + b.astype(f32)
    return jax.nn.log_softmax(out, axis=1)


if __name__ == "__main__":
    # GraphConv(in_features=32, out_features=16, dropout=0.5, fdim=48), eval mode.
    num_nodes = 384           # with block_rows=256: 2 row tiles + a masked ragged tail
    fdim = 48
    in_features = 32
    out_features = 16

    key = jax.random.PRNGKey(0)
    k_x, k_wm, k_bm, k_w1, k_w2, k_b = jax.random.split(key, 6)

    x = 0.25 * jax.random.normal(k_x, (num_nodes, fdim), dtype=jnp.float32)

    lim_m = 1.0 / math.sqrt(fdim)
    wm = jax.random.uniform(k_wm, (fdim, in_features), jnp.float32, -lim_m, lim_m)
    bm = jax.random.uniform(k_bm, (1, in_features), jnp.float32, -lim_m, lim_m)

    stdv1 = 1.0 / math.sqrt(in_features)
    stdv2 = 1.0 / math.sqrt(out_features)
    w1 = jax.random.uniform(k_w1, (in_features, in_features), jnp.float32, -stdv1, stdv1)
    w2 = jax.random.uniform(k_w2, (in_features, out_features), jnp.float32, -stdv2, stdv2)
    b = jax.random.uniform(k_b, (1, out_features), jnp.float32, -stdv2, stdv2)

    # The kernel feeds the MXU bf16 x/Wm operands.  Quantize those once here so
    # the kernel and the f32 reference see identical inputs; the remaining
    # differences are bf16 rounding of h inside the Gram accumulation and the
    # reassociated contraction order.
    xq = x.astype(jnp.bfloat16).astype(jnp.float32)
    wmq = wm.astype(jnp.bfloat16).astype(jnp.float32)

    out = graphconv_forward(xq, wmq, bm, w1, w2, b, block_rows=256)
    out = jax.block_until_ready(out)

    ref = graphconv_reference(xq, wmq, bm, w1, w2, b)

    assert out.shape == (num_nodes, out_features)
    # Tolerance reflects bf16 rounding of h feeding a contraction over 384 rows
    # (vs. the exact f32 reference with the original association order).
    assert jnp.allclose(out, ref, atol=1e-1, rtol=5e-2), (
        "mismatch vs reference: max abs err "
        f"{float(jnp.max(jnp.abs(out - ref)))}")

    print("KERNEL_OK")
</pallas_src>

<mosaic_0001>
module attributes {stable_mosaic.version = 11 : i64} {
  func.func @_gram_kernel(%arg0: i32, %arg1: memref<256x48xbf16, #tpu.memory_space<vmem>>, %arg2: memref<48x32xbf16, #tpu.memory_space<vmem>>, %arg3: memref<1x32xf32, #tpu.memory_space<vmem>>, %arg4: memref<32x32xf32, #tpu.memory_space<vmem>>, %arg5: memref<32x32xf32, #tpu.memory_space<vmem>>) attributes {dimension_semantics = [#tpu.dimension_semantics<arbitrary>], iteration_bounds = array<i64: 2>, scalar_prefetch = 0 : i64, scratch_operands = 1 : i64, tpu.core_type = #tpu.core_type<tc>, window_params = [{transform_indices = @transform_0, window_bounds = array<i64: 256, 48>}, {pipeline_mode = #tpu.pipeline_mode<synchronous>, transform_indices = @transform_1, window_bounds = array<i64: 48, 32>}, {pipeline_mode = #tpu.pipeline_mode<synchronous>, transform_indices = @transform_2, window_bounds = array<i64: 1, 32>}, {pipeline_mode = #tpu.pipeline_mode<synchronous>, transform_indices = @transform_3, window_bounds = array<i64: 32, 32>}]} {
    %c0_i32 = arith.constant 0 : i32
    %0 = arith.cmpi eq, %arg0, %c0_i32 : i32
    %1 = arith.extui %0 : i1 to i32
    %c0_i32_0 = arith.constant 0 : i32
    %2 = arith.cmpi ne, %1, %c0_i32_0 : i32
    scf.if %2 {
      %cst_13 = arith.constant 0.000000e+00 : f32
      %27 = vector.broadcast %cst_13 : f32 to vector<32x32xf32>
      %c0_14 = arith.constant 0 : index
      %c0_15 = arith.constant 0 : index
      %28 = vector.load %arg5[%c0_14, %c0_15] : memref<32x32xf32, #tpu.memory_space<vmem>>, vector<32x32xf32>
      tpu.vector_store %arg5[%c0_14, %c0_15], %27 {strides = array<i32>} : memref<32x32xf32, #tpu.memory_space<vmem>>, vector<32x32xf32>,
    } else {
    }
    %c0 = arith.constant 0 : index
    %c0_1 = arith.constant 0 : index
    %3 = vector.load %arg1[%c0, %c0_1] : memref<256x48xbf16, #tpu.memory_space<vmem>>, vector<256x48xbf16>
    %c0_2 = arith.constant 0 : index
    %c0_3 = arith.constant 0 : index
    %4 = vector.load %arg2[%c0_2, %c0_3] : memref<48x32xbf16, #tpu.memory_space<vmem>>, vector<48x32xbf16>
    %cst = arith.constant dense<0.000000e+00> : vector<256x32xf32>
    %5 = tpu.matmul %3, %4, %cst {dimension_numbers = #tpu.dot_dimension_numbers<[1], [0], [0], [1], [0, 0, 1, 1], [], []>} : vector<256x48xbf16>, vector<48x32xbf16>, vector<256x32xf32> -> vector<256x32xf32>
    %c0_4 = arith.constant 0 : index
    %c0_5 = arith.constant 0 : index
    %6 = vector.load %arg3[%c0_4, %c0_5] : memref<1x32xf32, #tpu.memory_space<vmem>>, vector<1x32xf32>
    %7 = vector.broadcast %6 : vector<1x32xf32> to vector<256x32xf32>
    %8 = arith.addf %5, %7 : vector<256x32xf32>
    %c256_i32 = arith.constant 256 : i32
    %9 = arith.muli %arg0, %c256_i32 : i32
    %10 = tpu.iota {dimensions = array<i32: 0>} : vector<256x1xi32>
    %11 = vector.broadcast %9 : i32 to vector<256x1xi32>
    %12 = arith.addi %11, %10 : vector<256x1xi32>
    %c384_i32 = arith.constant 384 : i32
    %13 = vector.broadcast %c384_i32 : i32 to vector<256x1xi32>
    %14 = arith.cmpi slt, %12, %13 : vector<256x1xi32>
    %cst_6 = arith.constant 0.000000e+00 : f32
    %15 = vector.shape_cast %14 : vector<256x1xi1> to vector<256x1xi1>
    %16 = vector.broadcast %15 : vector<256x1xi1> to vector<256x32xi1>
    %17 = vector.broadcast %cst_6 : f32 to vector<256x32xf32>
    %18 = arith.select %16, %8, %17 : vector<256x32xi1>, vector<256x32xf32>
    %19 = arith.truncf %18 : vector<256x32xf32> to vector<256x32xbf16>
    %c0_7 = arith.constant 0 : index
    %c0_8 = arith.constant 0 : index
    %20 = vector.load %arg5[%c0_7, %c0_8] : memref<32x32xf32, #tpu.memory_space<vmem>>, vector<32x32xf32>
    %cst_9 = arith.constant dense<0.000000e+00> : vector<32x32xf32>
    %21 = tpu.matmul %19, %19, %cst_9 {dimension_numbers = #tpu.dot_dimension_numbers<[0], [0], [1], [1], [0, 1, 1, 1], [], []>} : vector<256x32xbf16>, vector<256x32xbf16>, vector<32x32xf32> -> vector<32x32xf32>
    %22 = arith.addf %20, %21 : vector<32x32xf32>
    %c0_10 = arith.constant 0 : index
    %c0_11 = arith.constant 0 : index
    %23 = vector.load %arg5[%c0_10, %c0_11] : memref<32x32xf32, #tpu.memory_space<vmem>>, vector<32x32xf32>
    tpu.vector_store %arg5[%c0_10, %c0_11], %22 {strides = array<i32>} : memref<32x32xf32, #tpu.memory_space<vmem>>, vector<32x32xf32>,
    %c1_i32 = arith.constant 1 : i32
    %24 = arith.cmpi eq, %arg0, %c1_i32 : i32
    %25 = arith.extui %24 : i1 to i32
    %c0_i32_12 = arith.constant 0 : i32
    %26 = arith.cmpi ne, %25, %c0_i32_12 : i32
    scf.if %26 {
      %c0_13 = arith.constant 0 : index
      %c0_14 = arith.constant 0 : index
      %27 = vector.load %arg5[%c0_13, %c0_14] : memref<32x32xf32, #tpu.memory_space<vmem>>, vector<32x32xf32>
      %c0_15 = arith.constant 0 : index
      %c0_16 = arith.constant 0 : index
      %28 = vector.load %arg4[%c0_15, %c0_16] : memref<32x32xf32, #tpu.memory_space<vmem>>, vector<32x32xf32>
      tpu.vector_store %arg4[%c0_15, %c0_16], %27 {strides = array<i32>} : memref<32x32xf32, #tpu.memory_space<vmem>>, vector<32x32xf32>,
    } else {
    }
    return
  }
  func.func @transform_0(%arg0: i32) -> (i32, i32) {
    %c0_i32 = arith.constant 0 : i32
    %c0_i32_0 = arith.constant 0 : i32
    return %arg0, %c0_i32 : i32, i32
  }
  func.func @transform_1(%arg0: i32) -> (i32, i32) {
    %c0_i32 = arith.constant 0 : i32
    %c0_i32_0 = arith.constant 0 : i32
    %c0_i32_1 = arith.constant 0 : i32
    return %c0_i32, %c0_i32_0 : i32, i32
  }
  func.func @transform_2(%arg0: i32) -> (i32, i32) {
    %c0_i32 = arith.constant 0 : i32
    %c0_i32_0 = arith.constant 0 : i32
    %c0_i32_1 = arith.constant 0 : i32
    return %c0_i32, %c0_i32_0 : i32, i32
  }
  func.func @transform_3(%arg0: i32) -> (i32, i32) {
    %c0_i32 = arith.constant 0 : i32
    %c0_i32_0 = arith.constant 0 : i32
    %c0_i32_1 = arith.constant 0 : i32
    return %c0_i32, %c0_i32_0 : i32, i32
  }
}

module attributes {stable_mosaic.version = 11 : i64} {
  func.func @_out_kernel(%arg0: i32, %arg1: memref<256x48xbf16, #tpu.memory_space<vmem>>, %arg2: memref<48x32xbf16, #tpu.memory_space<vmem>>, %arg3: memref<1x32xf32, #tpu.memory_space<vmem>>, %arg4: memref<32x128xf32, #tpu.memory_space<vmem>>, %arg5: memref<1x128xf32, #tpu.memory_space<vmem>>, %arg6: memref<256x128xf32, #tpu.memory_space<vmem>>) attributes {dimension_semantics = [#tpu.dimension_semantics<parallel>], iteration_bounds = array<i64: 2>, scalar_prefetch = 0 : i64, scratch_operands = 0 : i64, tpu.core_type = #tpu.core_type<tc>, window_params = [{transform_indices = @transform_0, window_bounds = array<i64: 256, 48>}, {pipeline_mode = #tpu.pipeline_mode<synchronous>, transform_indices = @transform_1, window_bounds = array<i64: 48, 32>}, {pipeline_mode = #tpu.pipeline_mode<synchronous>, transform_indices = @transform_2, window_bounds = array<i64: 1, 32>}, {pipeline_mode = #tpu.pipeline_mode<synchronous>, transform_indices = @transform_3, window_bounds = array<i64: 32, 128>}, {pipeline_mode = #tpu.pipeline_mode<synchronous>, transform_indices = @transform_4, window_bounds = array<i64: 1, 128>}, {transform_indices = @transform_5, window_bounds = array<i64: 256, 128>}]} {
    %c0 = arith.constant 0 : index
    %c0_0 = arith.constant 0 : index
    %0 = vector.load %arg1[%c0, %c0_0] : memref<256x48xbf16, #tpu.memory_space<vmem>>, vector<256x48xbf16>
    %c0_1 = arith.constant 0 : index
    %c0_2 = arith.constant 0 : index
    %1 = vector.load %arg2[%c0_1, %c0_2] : memref<48x32xbf16, #tpu.memory_space<vmem>>, vector<48x32xbf16>
    %cst = arith.constant dense<0.000000e+00> : vector<256x32xf32>
    %2 = tpu.matmul %0, %1, %cst {dimension_numbers = #tpu.dot_dimension_numbers<[1], [0], [0], [1], [0, 0, 1, 1], [], []>} : vector<256x48xbf16>, vector<48x32xbf16>, vector<256x32xf32> -> vector<256x32xf32>
    %c0_3 = arith.constant 0 : index
    %c0_4 = arith.constant 0 : index
    %3 = vector.load %arg3[%c0_3, %c0_4] : memref<1x32xf32, #tpu.memory_space<vmem>>, vector<1x32xf32>
    %4 = vector.broadcast %3 : vector<1x32xf32> to vector<256x32xf32>
    %5 = arith.addf %2, %4 : vector<256x32xf32>
    %c0_5 = arith.constant 0 : index
    %c0_6 = arith.constant 0 : index
    %6 = vector.load %arg4[%c0_5, %c0_6] : memref<32x128xf32, #tpu.memory_space<vmem>>, vector<32x128xf32>
    %cst_7 = arith.constant dense<0.000000e+00> : vector<256x128xf32>
    %7 = tpu.matmul %5, %6, %cst_7 {dimension_numbers = #tpu.dot_dimension_numbers<[1], [0], [0], [1], [0, 0, 1, 1], [], []>} : vector<256x32xf32>, vector<32x128xf32>, vector<256x128xf32> -> vector<256x128xf32>
    %c0_8 = arith.constant 0 : index
    %c0_9 = arith.constant 0 : index
    %8 = vector.load %arg5[%c0_8, %c0_9] : memref<1x128xf32, #tpu.memory_space<vmem>>, vector<1x128xf32>
    %9 = vector.broadcast %8 : vector<1x128xf32> to vector<256x128xf32>
    %10 = arith.addf %7, %9 : vector<256x128xf32>
    %cst_10 = arith.constant dense<0xFF800000> : vector<256xf32>
    %11 = vector.multi_reduction <maximumf>, %10, %cst_10 [1] : vector<256x128xf32> to vector<256xf32>
    %12 = vector.shape_cast %11 : vector<256xf32> to vector<256x1xf32>
    %13 = vector.broadcast %12 : vector<256x1xf32> to vector<256x128xf32>
    %14 = arith.subf %10, %13 : vector<256x128xf32>
    %15 = math.exp %14 : vector<256x128xf32>
    %cst_11 = arith.constant dense<0.000000e+00> : vector<256xf32>
    %16 = vector.multi_reduction <add>, %15, %cst_11 [1] : vector<256x128xf32> to vector<256xf32>
    %17 = vector.shape_cast %16 : vector<256xf32> to vector<256x1xf32>
    %18 = math.log %17 : vector<256x1xf32>
    %19 = vector.broadcast %18 : vector<256x1xf32> to vector<256x128xf32>
    %20 = arith.subf %14, %19 : vector<256x128xf32>
    %c0_12 = arith.constant 0 : index
    %c0_13 = arith.constant 0 : index
    %21 = vector.load %arg6[%c0_12, %c0_13] : memref<256x128xf32, #tpu.memory_space<vmem>>, vector<256x128xf32>
    tpu.vector_store %arg6[%c0_12, %c0_13], %20 {strides = array<i32>} : memref<256x128xf32, #tpu.memory_space<vmem>>, vector<256x128xf32>,
    return
  }
  func.func @transform_0(%arg0: i32) -> (i32, i32) {
    %c0_i32 = arith.constant 0 : i32
    %c0_i32_0 = arith.constant 0 : i32
    return %arg0, %c0_i32 : i32, i32
  }
  func.func @transform_1(%arg0: i32) -> (i32, i32) {
    %c0_i32 = arith.constant 0 : i32
    %c0_i32_0 = arith.constant 0 : i32
    %c0_i32_1 = arith.constant 0 : i32
    return %c0_i32, %c0_i32_0 : i32, i32
  }
  func.func @transform_2(%arg0: i32) -> (i32, i32) {
    %c0_i32 = arith.constant 0 : i32
    %c0_i32_0 = arith.constant 0 : i32
    %c0_i32_1 = arith.constant 0 : i32
    return %c0_i32, %c0_i32_0 : i32, i32
  }
  func.func @transform_3(%arg0: i32) -> (i32, i32) {
    %c0_i32 = arith.constant 0 : i32
    %c0_i32_0 = arith.constant 0 : i32
    %c0_i32_1 = arith.constant 0 : i32
    return %c0_i32, %c0_i32_0 : i32, i32
  }
  func.func @transform_4(%arg0: i32) -> (i32, i32) {
    %c0_i32 = arith.constant 0 : i32
    %c0_i32_0 = arith.constant 0 : i32
    %c0_i32_1 = arith.constant 0 : i32
    return %c0_i32, %c0_i32_0 : i32, i32
  }
  func.func @transform_5(%arg0: i32) -> (i32, i32) {
    %c0_i32 = arith.constant 0 : i32
    %c0_i32_0 = arith.constant 0 : i32
    return %arg0, %c0_i32 : i32, i32
  }
}

</mosaic_0001>

<llo_original>
// kernel: graphconv_forward.3
$region0: #{graphconv_forward.3}
  #allocation0 [shape = 'u32[]', space=smem, size = 0x4, offset = 0x4, fixed_abs, tag = 'smem constant byte address 0x4 - core index']
  #allocation1 [shape = 'u32[144,128]{1,0:T(1,128)}', space=vmem, size = 0x12000, scoped, tag = 'internal scratch']
  %s0 = inlined_call_operand.vmem [shape: bf16[512,48], index: 0, kind: input, shape index: {}]
  %s1 = inlined_call_operand.vmem [shape: bf16[48,32], index: 1, kind: input, shape index: {}]
  %s2 = inlined_call_operand.vmem [shape: f32[1,32], index: 2, kind: input, shape index: {}]
  %s3 = inlined_call_operand.vmem [shape: f32[32,128], index: 3, kind: input, shape index: {}]
  %s4 = inlined_call_operand.vmem [shape: f32[1,128], index: 4, kind: input, shape index: {}]
  %s5 = inlined_call_operand.vmem [shape: f32[512,128], index: 5, kind: output, shape index: {}]
  %s6 = sld [smem:[#allocation0]]
  $region53: #{graphconv_forward.3} parent=0
    _
  %s8 = ssub.s32 1, %s6
  %s9 = scalar_select 0, %s8, %s6
  loop: start=0, step=1, limit=4
  $region2: #{graphconv_forward.3} parent=0 // loop_pre_header
    _
  $region3: #{graphconv_forward.3} parent=0 // loop_header
    %s11 = sphi 0, %s15
    %p12 = scmp.ge.s32.totalorder %s11, 4
    %s21 = sphi 0, %s23
    %s24 = sphi 0, %s21
    %s25 = sphi 0, %s24
    %s41 = sphi 0, %s25
    %s45 = sphi 0, %s45
    %s47 = sphi 0, %s45
    %s48 = sphi 0, %s47
    %s62 = sphi 0, %s48
    %s66 = sphi 0, %s66
    %s68 = sphi 0, %s66
    %s69 = sphi 0, %s68
    %s83 = sphi 0, %s69
    %s87 = sphi 0, %s87
    %s89 = sphi 0, %s87
    %s90 = sphi 0, %s89
    %s104 = sphi 0, %s90
    %s108 = sphi 0, %s108
    %s110 = sphi 0, %s108
    %s111 = sphi 0, %s110
    %s125 = sphi 0, %s111
    %s131 = sphi 0, %s133
    %s134 = sphi 0, %s131
    %s135 = sphi 0, %s134
    %s151 = sphi 0, %s135
  $region4: #{graphconv_forward.3} parent=0 // loop_header_branch
    %14 = sbr.rel (%p12) target = $region8
  $region5: #{graphconv_forward.3} parent=0 // loop_body
    %s16 = ssub.s32 %s11, 1
    %s17 = ssub.s32 %s11, 2
    %s18 = sadd.s32 %s11, 1
    %s19 = ssub.s32 %s11, %s18
    %p20 = scmp.eq.s32.totalorder %s19, 0
    %s22 = sadd.s32 %s21, 1
    %s23 = scalar_select %p20, %s21, %s22
    %p26 = pneg %p20
    %p27 = scmp.eq.s32.totalorder %s11, 1
    %p28 = por %p26, %p27
    %p29 = scmp.ne.s32.totalorder %s21, %s24
    %p30 = scmp.eq.s32.totalorder %s11, 0
    %p31 = por %p29, %p30
    %p32 = scmp.ne.s32.totalorder %s21, %s24
    %p33 = scmp.eq.s32.totalorder %s16, 1
    %p34 = por %p32, %p33
    %p35 = scmp.ne.s32.totalorder %s24, %s25
    %p36 = scmp.eq.s32.totalorder %s16, 0
    %p37 = por %p35, %p36
    %p38 = scmp.ne.s32.totalorder %s24, %s25
    %p39 = scmp.eq.s32.totalorder %s17, 1
    %p40 = por %p38, %p39
    %p42 = scmp.ne.s32.totalorder %s25, %s41
    %p43 = scmp.eq.s32.totalorder %s17, 0
    %p44 = por %p42, %p43
    %s46 = sadd.s32 %s45, 1
    %p49 = scmp.eq.s32.totalorder %s11, 1
    %p50 = scmp.ne.s32.totalorder %s45, %s47
    %p51 = scmp.eq.s32.totalorder %s11, 0
    %p52 = por %p50, %p51
    %p53 = scmp.ne.s32.totalorder %s45, %s47
    %p54 = scmp.eq.s32.totalorder %s16, 1
    %p55 = por %p53, %p54
    %p56 = scmp.ne.s32.totalorder %s47, %s48
    %p57 = scmp.eq.s32.totalorder %s16, 0
    %p58 = por %p56, %p57
    %p59 = scmp.ne.s32.totalorder %s47, %s48
    %p60 = scmp.eq.s32.totalorder %s17, 1
    %p61 = por %p59, %p60
    %p63 = scmp.ne.s32.totalorder %s48, %s62
    %p64 = scmp.eq.s32.totalorder %s17, 0
    %p65 = por %p63, %p64
    %s67 = sadd.s32 %s66, 1
    %p70 = scmp.eq.s32.totalorder %s11, 1
    %p71 = scmp.ne.s32.totalorder %s66, %s68
    %p72 = scmp.eq.s32.totalorder %s11, 0
    %p73 = por %p71, %p72
    %p74 = scmp.ne.s32.totalorder %s66, %s68
    %p75 = scmp.eq.s32.totalorder %s16, 1
    %p76 = por %p74, %p75
    %p77 = scmp.ne.s32.totalorder %s68, %s69
    %p78 = scmp.eq.s32.totalorder %s16, 0
    %p79 = por %p77, %p78
    %p80 = scmp.ne.s32.totalorder %s68, %s69
    %p81 = scmp.eq.s32.totalorder %s17, 1
    %p82 = por %p80, %p81
    %p84 = scmp.ne.s32.totalorder %s69, %s83
    %p85 = scmp.eq.s32.totalorder %s17, 0
    %p86 = por %p84, %p85
    %s88 = sadd.s32 %s87, 1
    %p91 = scmp.eq.s32.totalorder %s11, 1
    %p92 = scmp.ne.s32.totalorder %s87, %s89
    %p93 = scmp.eq.s32.totalorder %s11, 0
    %p94 = por %p92, %p93
    %p95 = scmp.ne.s32.totalorder %s87, %s89
    %p96 = scmp.eq.s32.totalorder %s16, 1
    %p97 = por %p95, %p96
    %p98 = scmp.ne.s32.totalorder %s89, %s90
    %p99 = scmp.eq.s32.totalorder %s16, 0
    %p100 = por %p98, %p99
    %p101 = scmp.ne.s32.totalorder %s89, %s90
    %p102 = scmp.eq.s32.totalorder %s17, 1
    %p103 = por %p101, %p102
    %p105 = scmp.ne.s32.totalorder %s90, %s104
    %p106 = scmp.eq.s32.totalorder %s17, 0
    %p107 = por %p105, %p106
    %s109 = sadd.s32 %s108, 1
    %p112 = scmp.eq.s32.totalorder %s11, 1
    %p113 = scmp.ne.s32.totalorder %s108, %s110
    %p114 = scmp.eq.s32.totalorder %s11, 0
    %p115 = por %p113, %p114
    %p116 = scmp.ne.s32.totalorder %s108, %s110
    %p117 = scmp.eq.s32.totalorder %s16, 1
    %p118 = por %p116, %p117
    %p119 = scmp.ne.s32.totalorder %s110, %s111
    %p120 = scmp.eq.s32.totalorder %s16, 0
    %p121 = por %p119, %p120
    %p122 = scmp.ne.s32.totalorder %s110, %s111
    %p123 = scmp.eq.s32.totalorder %s17, 1
    %p124 = por %p122, %p123
    %p126 = scmp.ne.s32.totalorder %s111, %s125
    %p127 = scmp.eq.s32.totalorder %s17, 0
    %p128 = por %p126, %p127
    %s129 = ssub.s32 %s11, %s18
    %p130 = scmp.eq.s32.totalorder %s129, 0
    %s132 = sadd.s32 %s131, 1
    %s133 = scalar_select %p130, %s131, %s132
    %p136 = pneg %p130
    %p137 = scmp.eq.s32.totalorder %s11, 1
    %p138 = por %p136, %p137
    %p139 = scmp.ne.s32.totalorder %s131, %s134
    %p140 = scmp.eq.s32.totalorder %s11, 0
    %p141 = por %p139, %p140
    %p142 = scmp.ne.s32.totalorder %s131, %s134
    %p143 = scmp.eq.s32.totalorder %s16, 1
    %p144 = por %p142, %p143
    %p145 = scmp.ne.s32.totalorder %s134, %s135
    %p146 = scmp.eq.s32.totalorder %s16, 0
    %p147 = por %p145, %p146
    %p148 = scmp.ne.s32.totalorder %s134, %s135
    %p149 = scmp.eq.s32.totalorder %s17, 1
    %p150 = por %p148, %p149
    %p152 = scmp.ne.s32.totalorder %s135, %s151
    %p153 = scmp.eq.s32.totalorder %s17, 0
    %p154 = por %p152, %p153
    %p155 = scmp.le.s32.totalorder 1, %s11
    %p156 = scmp.lt.s32.totalorder %s11, 3
    %p157 = pnand %p155, %p156
    %p158 = pneg %p157
    // Predicated region
    $region9: #{graphconv_forward.3} parent=5 // pred_check
      _
    $region10: #{graphconv_forward.3} parent=5 // pred_check_branch
      %160 = sbr.rel (%p157) target = $region12
    $region11: #{graphconv_forward.3} parent=5 // pred_region
      %s161 = ssub.s32 %s11, 1
      // Predicated region
      $region13: #{graphconv_forward.3} parent=11 // pred_check
        %p162 = pneg %p58
      $region14: #{graphconv_forward.3} parent=11 // pred_check_branch
        %164 = sbr.rel (%p162) target = $region16
      $region15: #{graphconv_forward.3} parent=11 // pred_region
        _
      $region16: #{graphconv_forward.3} parent=11 // pred_fallthru
        _
      // Predicated region
      $region17: #{graphconv_forward.3} parent=11 // pred_check
        %p165 = pneg %p79
      $region18: #{graphconv_forward.3} parent=11 // pred_check_branch
        %167 = sbr.rel (%p165) target = $region20
      $region19: #{graphconv_forward.3} parent=11 // pred_region
        _
      $region20: #{graphconv_forward.3} parent=11 // pred_fallthru
        _
      // Predicated region
      $region21: #{graphconv_forward.3} parent=11 // pred_check
        %p168 = pneg %p100
      $region22: #{graphconv_forward.3} parent=11 // pred_check_branch
        %170 = sbr.rel (%p168) target = $region24
      $region23: #{graphconv_forward.3} parent=11 // pred_region
        _
      $region24: #{graphconv_forward.3} parent=11 // pred_fallthru
        _
      // Predicated region
      $region25: #{graphconv_forward.3} parent=11 // pred_check
        %p171 = pneg %p121
      $region26: #{graphconv_forward.3} parent=11 // pred_check_branch
        %173 = sbr.rel (%p171) target = $region28
      $region27: #{graphconv_forward.3} parent=11 // pred_region
        _
      $region28: #{graphconv_forward.3} parent=11 // pred_fallthru
        _
    $region12: #{graphconv_forward.3} parent=5 // pred_fallthru
      _
    %p174 = scmp.lt.s32.totalorder %s11, 2
    // Predicated region
    $region29: #{graphconv_forward.3} parent=5 // pred_check
      %p175 = pneg %p174
    $region30: #{graphconv_forward.3} parent=5 // pred_check_branch
      %177 = sbr.rel (%p175) target = $region32
    $region31: #{graphconv_forward.3} parent=5 // pred_region
      // Predicated region
      $region33: #{graphconv_forward.3} parent=31 // pred_check
        %p178 = pneg %p31
      $region34: #{graphconv_forward.3} parent=31 // pred_check_branch
        %180 = sbr.rel (%p178) target = $region36
      $region35: #{graphconv_forward.3} parent=31 // pred_region
        %s181 = smul.u32 32, %s11
        %p182 = scmp.lt.s32.totalorder %s181, 63
        %s183 = scalar_select %p182, %s181, 63
        %s184 = smul.addr %s183, 4
        %s185 = scalar_lea.vmem %s0, %s184
        %s186 = smul.u32 32, %s11
      $region36: #{graphconv_forward.3} parent=31 // pred_fallthru
        _
    $region32: #{graphconv_forward.3} parent=5 // pred_fallthru
      _
    %p187 = scmp.le.s32.totalorder 1, %s11
    %p188 = scmp.lt.s32.totalorder %s11, 3
    %p189 = pnand %p187, %p188
    %p190 = pneg %p189
    // Predicated region
    $region37: #{graphconv_forward.3} parent=5 // pred_check
      _
    $region38: #{graphconv_forward.3} parent=5 // pred_check_branch
      %192 = sbr.rel (%p189) target = $region40
    $region39: #{graphconv_forward.3} parent=5 // pred_region
      %s193 = ssub.s32 %s11, 1
      %s194 = smul.u32 32, %s16
      %p195 = scmp.lt.s32.totalorder %s194, 63
      %s196 = scalar_select %p195, %s194, 63
      %s197 = smul.addr %s196, 4
      %s198 = scalar_lea.vmem %s0, %s197
      %p199 = pneg %p37
      %p200 = pneg %p34
      %p201 = pneg %p58
      %p202 = pneg %p55
      %p203 = pneg %p79
      %p204 = pneg %p76
      %p205 = pneg %p100
      %p206 = pneg %p97
      %p207 = pneg %p121
      %p208 = pneg %p118
      %p209 = pneg %p147
      %p210 = pneg %p144
      %s211 = smul.u32 32, %s16
      %p212 = scmp.lt.s32.totalorder %s211, 63
      %s213 = scalar_select %p212, %s211, 63
      %s214 = smul.addr %s213, 8
      %s215 = scalar_lea.vmem %s5, %s214
      %s216 = smul.u32 32, %s16
      %p217 = scmp.lt.s32.totalorder %s216, 63
      %s218 = scalar_select %p217, %s216, 63
      %s219 = smul.addr %s218, 4
      %s220 = scalar_lea.vmem %s0, %s219
      %s221 = smul.u32 32, %s16
      %s222 = smul.u32 32, %s16
      %p223 = scmp.lt.s32.totalorder %s222, 63
      %s224 = scalar_select %p223, %s222, 63
      %s225 = smul.addr %s224, 8
      %s226 = scalar_lea.vmem %s5, %s225
      %s227 = smul.u32 32, %s16
      %v229 = vld [vmem:[%s220] sm:$0xf]
      %v230 = vld [vmem:[%s220 + $0x4] sm:$0xf]
      %v231 = vld [vmem:[%s220 + $0x8] sm:$0xf]
      %v232 = vld [vmem:[%s220 + $0xc] sm:$0xf]
      %v233 = vld [vmem:[%s220 + $0x10] sm:$0xf]
      %v234 = vld [vmem:[%s220 + $0x14] sm:$0xf]
      %v235 = vld [vmem:[%s220 + $0x18] sm:$0xf]
      %v236 = vld [vmem:[%s220 + $0x1c] sm:$0xf]
      %v237 = vld [vmem:[%s220 + $0x20] sm:$0xf]
      %v238 = vld [vmem:[%s220 + $0x24] sm:$0xf]
      %v239 = vld [vmem:[%s220 + $0x28] sm:$0xf]
      %v240 = vld [vmem:[%s220 + $0x2c] sm:$0xf]
      %v241 = vld [vmem:[%s220 + $0x30] sm:$0xf]
      %v242 = vld [vmem:[%s220 + $0x34] sm:$0xf]
      %v243 = vld [vmem:[%s220 + $0x38] sm:$0xf]
      %v244 = vld [vmem:[%s220 + $0x3c] sm:$0xf]
      %v245 = vld [vmem:[%s220 + $0x40] sm:$0xf]
      %v246 = vld [vmem:[%s220 + $0x44] sm:$0xf]
      %v247 = vld [vmem:[%s220 + $0x48] sm:$0xf]
      %v248 = vld [vmem:[%s220 + $0x4c] sm:$0xf]
      %v249 = vld [vmem:[%s220 + $0x50] sm:$0xf]
      %v250 = vld [vmem:[%s220 + $0x54] sm:$0xf]
      %v251 = vld [vmem:[%s220 + $0x58] sm:$0xf]
      %v252 = vld [vmem:[%s220 + $0x5c] sm:$0xf]
      %v253 = vld [vmem:[%s220 + $0x60] sm:$0xf]
      %v254 = vld [vmem:[%s220 + $0x64] sm:$0xf]
      %v255 = vld [vmem:[%s220 + $0x68] sm:$0xf]
      %v256 = vld [vmem:[%s220 + $0x6c] sm:$0xf]
      %v257 = vld [vmem:[%s220 + $0x70] sm:$0xf]
      %v258 = vld [vmem:[%s220 + $0x74] sm:$0xf]
      %v259 = vld [vmem:[%s220 + $0x78] sm:$0xf]
      %v260 = vld [vmem:[%s220 + $0x7c] sm:$0xf]
      %v261 = vld [vmem:[%s1] sm:$0xf]
      %v262 = vld [vmem:[%s1 + $0x4] sm:$0xf]
      %v263 = vld [vmem:[%s1 + $0x8] sm:$0xf]
      %v264 = vld [vmem:[%s1 + $0xc] sm:$0xf]
      %v265 = vld [vmem:[%s1 + $0x10] sm:$0xf]
      %v266 = vld [vmem:[%s1 + $0x14] sm:$0xf]
      %v267 = vld [vmem:[%s2] sm:$0x1]
      %v269 = vlaneseq
      %v270 = vshrl.u32 %v269, 7
      %v271 = vsub.s32 0, %v270
      %v272 = vrot.slane %v267, %v271
      %v306 = vunpack.c.l.b16 %v229
      %v307 = vunpack.c.l.b16 %v230
      %v308 = vunpack.c.l.b16 %v231
      %v309 = vunpack.c.l.b16 %v232
      %v310 = vunpack.c.l.b16 %v233
      %v311 = vunpack.c.l.b16 %v234
      %v312 = vunpack.c.l.b16 %v235
      %v313 = vunpack.c.l.b16 %v236
      %v314 = vunpack.c.l.b16 %v237
      %v315 = vunpack.c.l.b16 %v238
      %v316 = vunpack.c.l.b16 %v239
      %v317 = vunpack.c.l.b16 %v240
      %v318 = vunpack.c.l.b16 %v241
      %v319 = vunpack.c.l.b16 %v242
      %v320 = vunpack.c.l.b16 %v243
      %v321 = vunpack.c.l.b16 %v244
      %v322 = vunpack.c.l.b16 %v245
      %v323 = vunpack.c.l.b16 %v246
      %v324 = vunpack.c.l.b16 %v247
      %v325 = vunpack.c.l.b16 %v248
      %v326 = vunpack.c.l.b16 %v249
      %v327 = vunpack.c.l.b16 %v250
      %v328 = vunpack.c.l.b16 %v251
      %v329 = vunpack.c.l.b16 %v252
      %v330 = vunpack.c.l.b16 %v253
      %v331 = vunpack.c.l.b16 %v254
      %v332 = vunpack.c.l.b16 %v255
      %v333 = vunpack.c.l.b16 %v256
      %v334 = vunpack.c.l.b16 %v257
      %v335 = vunpack.c.l.b16 %v258
      %v336 = vunpack.c.l.b16 %v259
      %v337 = vunpack.c.l.b16 %v260
      %v338 = vpack.c.b16 %v307, %v306
      %v339 = vpack.c.b16 %v309, %v308
      %v340 = vpack.c.b16 %v311, %v310
      %v341 = vpack.c.b16 %v313, %v312
      %v342 = vpack.c.b16 %v315, %v314
      %v343 = vpack.c.b16 %v317, %v316
      %v344 = vpack.c.b16 %v319, %v318
      %v345 = vpack.c.b16 %v321, %v320
      %v346 = vpack.c.b16 %v323, %v322
      %v347 = vpack.c.b16 %v325, %v324
      %v348 = vpack.c.b16 %v327, %v326
      %v349 = vpack.c.b16 %v329, %v328
      %v350 = vpack.c.b16 %v331, %v330
      %v351 = vpack.c.b16 %v333, %v332
      %v352 = vpack.c.b16 %v335, %v334
      %v353 = vpack.c.b16 %v337, %v336
      %v360 = vunpack.c.l.b16 %v261
      %v361 = vunpack.c.l.b16 %v262
      %v362 = vunpack.c.l.b16 %v263
      %v363 = vunpack.c.l.b16 %v264
      %v364 = vunpack.c.l.b16 %v265
      %v365 = vunpack.c.l.b16 %v266
      %v366 = vpack.c.b16 %v361, %v360
      %v367 = vpack.c.b16 %v363, %v362
      %v368 = vpack.c.b16 %v365, %v364
      %vm372 = vcmask 392192
      %v374 = vsel %vm372, %v338, 0
      %v377 = vsel %vm372, %v339, 0
      %v380 = vsel %vm372, %v340, 0
      %v383 = vsel %vm372, %v341, 0
      %v386 = vsel %vm372, %v342, 0
      %v389 = vsel %vm372, %v343, 0
      %v392 = vsel %vm372, %v344, 0
      %v395 = vsel %vm372, %v345, 0
      %v398 = vsel %vm372, %v346, 0
      %v401 = vsel %vm372, %v347, 0
      %v404 = vsel %vm372, %v348, 0
      %v407 = vsel %vm372, %v349, 0
      %v410 = vsel %vm372, %v350, 0
      %v413 = vsel %vm372, %v351, 0
      %v416 = vsel %vm372, %v352, 0
      %v419 = vsel %vm372, %v353, 0
      %421 = vmatprep.subr.bf16.mxu0 0
      %422 = vmatpush1.bf16.msra.mxu0 %v366
      %423 = vmatprep.subr.bf16.mxu0 0
      %424 = vmatpush1.bf16.msra.mxu0 %v367
      %425 = vmatprep.subr.bf16.mxu0 0
      %426 = vmatpush1.bf16.msra.mxu0 %v368
      %427 = vmatprep.subr.bf16.mxu0 0
      %428 = vmatpush1.bf16.msra.mxu0 0
      %429 = vmatprep.subr.bf16.mxu0 0
      %430 = vmatpush1.bf16.msra.mxu0 0
      %431 = vmatprep.subr.bf16.mxu0 0
      %432 = vmatpush1.bf16.msra.mxu0 0
      %433 = vmatprep.subr.bf16.mxu0 0
      %434 = vmatpush1.bf16.msra.mxu0 0
      %435 = vmatprep.subr.bf16.mxu0 0
      %436 = vmatpush1.bf16.msra.mxu0 0
      %437 = vmatprep.subr.bf16.mxu0 0
      %438 = vmatpush1.bf16.msra.mxu0 0
      %439 = vmatprep.subr.bf16.mxu0 0
      %440 = vmatpush1.bf16.msra.mxu0 0
      %441 = vmatprep.subr.bf16.mxu0 0
      %442 = vmatpush1.bf16.msra.mxu0 0
      %443 = vmatprep.subr.bf16.mxu0 0
      %444 = vmatpush1.bf16.msra.mxu0 0
      %445 = vmatprep.subr.bf16.mxu0 0
      %446 = vmatpush1.bf16.msra.mxu0 0
      %447 = vmatprep.subr.bf16.mxu0 0
      %448 = vmatpush1.bf16.msra.mxu0 0
      %449 = vmatprep.subr.bf16.mxu0 0
      %450 = vmatpush1.bf16.msra.mxu0 0
      %451 = vmatprep.subr.bf16.mxu0 0
      %452 = vmatpush1.bf16.msra.mxu0 0
      %453 = vmatprep.mubr.bf16.mxu0 0
      %454 = vmatmul.mubr.bf16.gmra.mrb[0].mxu0 %v374
      %v455 = vpop.f32.mrb[0].mxu0
      %v456 = vadd.f32 %v272, %v455
      %v457 = vpop.f32.mrb[0].mxu0
      %v458 = vpop.f32.mrb[0].mxu0
      %v459 = vadd.f32 %v272, %v458
      %v460 = vpop.f32.mrb[0].mxu0
      %461 = vmatprep.mubr.bf16.mxu0 0
      %462 = vmatmul.mubr.bf16.gmra.mrb[0].mxu0 %v377
      %v463 = vpop.f32.mrb[0].mxu0
      %v464 = vadd.f32 %v272, %v463
      %v465 = vpop.f32.mrb[0].mxu0
      %v466 = vpop.f32.mrb[0].mxu0
      %v467 = vadd.f32 %v272, %v466
      %v468 = vpop.f32.mrb[0].mxu0
      %469 = vmatprep.mubr.bf16.mxu0 0
      %470 = vmatmul.mubr.bf16.gmra.mrb[0].mxu0 %v380
      %v471 = vpop.f32.mrb[0].mxu0
      %v472 = vadd.f32 %v272, %v471
      %v473 = vpop.f32.mrb[0].mxu0
      %v474 = vpop.f32.mrb[0].mxu0
      %v475 = vadd.f32 %v272, %v474
      %v476 = vpop.f32.mrb[0].mxu0
      %477 = vmatprep.mubr.bf16.mxu0 0
      %478 = vmatmul.mubr.bf16.gmra.mrb[0].mxu0 %v383
      %v479 = vpop.f32.mrb[0].mxu0
      %v480 = vadd.f32 %v272, %v479
      %v481 = vpop.f32.mrb[0].mxu0
      %v482 = vpop.f32.mrb[0].mxu0
      %v483 = vadd.f32 %v272, %v482
      %v484 = vpop.f32.mrb[0].mxu0
      %485 = vmatprep.mubr.bf16.mxu0 0
      %486 = vmatmul.mubr.bf16.gmra.mrb[0].mxu0 %v386
      %v487 = vpop.f32.mrb[0].mxu0
      %v488 = vadd.f32 %v272, %v487
      %v489 = vpop.f32.mrb[0].mxu0
      %v490 = vpop.f32.mrb[0].mxu0
      %v491 = vadd.f32 %v272, %v490
      %v492 = vpop.f32.mrb[0].mxu0
      %493 = vmatprep.mubr.bf16.mxu0 0
      %494 = vmatmul.mubr.bf16.gmra.mrb[0].mxu0 %v389
      %v495 = vpop.f32.mrb[0].mxu0
      %v496 = vadd.f32 %v272, %v495
      %v497 = vpop.f32.mrb[0].mxu0
      %v498 = vpop.f32.mrb[0].mxu0
      %v499 = vadd.f32 %v272, %v498
      %v500 = vpop.f32.mrb[0].mxu0
      %501 = vmatprep.mubr.bf16.mxu0 0
      %502 = vmatmul.mubr.bf16.gmra.mrb[0].mxu0 %v392
      %v503 = vpop.f32.mrb[0].mxu0
      %v504 = vadd.f32 %v272, %v503
      %v505 = vpop.f32.mrb[0].mxu0
      %v506 = vpop.f32.mrb[0].mxu0
      %v507 = vadd.f32 %v272, %v506
      %v508 = vpop.f32.mrb[0].mxu0
      %509 = vmatprep.mubr.bf16.mxu0 0
      %510 = vmatmul.mubr.bf16.gmra.mrb[0].mxu0 %v395
      %v511 = vpop.f32.mrb[0].mxu0
      %v512 = vadd.f32 %v272, %v511
      %v513 = vpop.f32.mrb[0].mxu0
      %v514 = vpop.f32.mrb[0].mxu0
      %v515 = vadd.f32 %v272, %v514
      %v516 = vpop.f32.mrb[0].mxu0
      %517 = vmatprep.mubr.bf16.mxu0 0
      %518 = vmatmul.mubr.bf16.gmra.mrb[0].mxu0 %v398
      %v519 = vpop.f32.mrb[0].mxu0
      %v520 = vadd.f32 %v272, %v519
      %v521 = vpop.f32.mrb[0].mxu0
      %v522 = vpop.f32.mrb[0].mxu0
      %v523 = vadd.f32 %v272, %v522
      %v524 = vpop.f32.mrb[0].mxu0
      %525 = vmatprep.mubr.bf16.mxu0 0
      %526 = vmatmul.mubr.bf16.gmra.mrb[0].mxu0 %v401
      %v527 = vpop.f32.mrb[0].mxu0
      %v528 = vadd.f32 %v272, %v527
      %v529 = vpop.f32.mrb[0].mxu0
      %v530 = vpop.f32.mrb[0].mxu0
      %v531 = vadd.f32 %v272, %v530
      %v532 = vpop.f32.mrb[0].mxu0
      %533 = vmatprep.mubr.bf16.mxu0 0
      %534 = vmatmul.mubr.bf16.gmra.mrb[0].mxu0 %v404
      %v535 = vpop.f32.mrb[0].mxu0
      %v536 = vadd.f32 %v272, %v535
      %v537 = vpop.f32.mrb[0].mxu0
      %v538 = vpop.f32.mrb[0].mxu0
      %v539 = vadd.f32 %v272, %v538
      %v540 = vpop.f32.mrb[0].mxu0
      %541 = vmatprep.mubr.bf16.mxu0 0
      %542 = vmatmul.mubr.bf16.gmra.mrb[0].mxu0 %v407
      %v543 = vpop.f32.mrb[0].mxu0
      %v544 = vadd.f32 %v272, %v543
      %v545 = vpop.f32.mrb[0].mxu0
      %v546 = vpop.f32.mrb[0].mxu0
      %v547 = vadd.f32 %v272, %v546
      %v548 = vpop.f32.mrb[0].mxu0
      %549 = vmatprep.mubr.bf16.mxu0 0
      %550 = vmatmul.mubr.bf16.gmra.mrb[0].mxu0 %v410
      %v551 = vpop.f32.mrb[0].mxu0
      %v552 = vadd.f32 %v272, %v551
      %v553 = vpop.f32.mrb[0].mxu0
      %v554 = vpop.f32.mrb[0].mxu0
      %v555 = vadd.f32 %v272, %v554
      %v556 = vpop.f32.mrb[0].mxu0
      %557 = vmatprep.mubr.bf16.mxu0 0
      %558 = vmatmul.mubr.bf16.gmra.mrb[0].mxu0 %v413
      %v559 = vpop.f32.mrb[0].mxu0
      %v560 = vadd.f32 %v272, %v559
      %v561 = vpop.f32.mrb[0].mxu0
      %v562 = vpop.f32.mrb[0].mxu0
      %v563 = vadd.f32 %v272, %v562
      %v564 = vpop.f32.mrb[0].mxu0
      %565 = vmatprep.mubr.bf16.mxu0 0
      %566 = vmatmul.mubr.bf16.gmra.mrb[0].mxu0 %v416
      %v567 = vpop.f32.mrb[0].mxu0
      %v568 = vadd.f32 %v272, %v567
      %v569 = vpop.f32.mrb[0].mxu0
      %v570 = vpop.f32.mrb[0].mxu0
      %v571 = vadd.f32 %v272, %v570
      %v572 = vpop.f32.mrb[0].mxu0
      %573 = vmatprep.mubr.bf16.mxu0 0
      %574 = vmatmul.mubr.bf16.gmra.mrb[0].mxu0 %v419
      %v575 = vpop.f32.mrb[0].mxu0
      %v576 = vadd.f32 %v272, %v575
      %v577 = vpop.f32.mrb[0].mxu0
      %v578 = vpop.f32.mrb[0].mxu0
      %v579 = vadd.f32 %v272, %v578
      %v580 = vpop.f32.mrb[0].mxu0
      %581 = vdwg.mxu0
      %v582 = vld [vmem:[%s3] sm:$0xff]
      %v583 = vld [vmem:[%s3 + $0x8] sm:$0xff]
      %v584 = vld [vmem:[%s3 + $0x10] sm:$0xff]
      %v585 = vld [vmem:[%s3 + $0x18] sm:$0xff]
      %v586 = vld [vmem:[%s4] sm:$0x1]
      %v588 = vlaneseq
      %v589 = vshrl.u32 %v588, 7
      %v590 = vsub.s32 0, %v589
      %v591 = vrot.slane %v586, %v590
      %vm593 = vcmask 261120
      %v595 = vsel %vm593, %v456, 0
      %v598 = vsel %vm593, %v459, 0
      %v601 = vsel %vm593, %v464, 0
      %v604 = vsel %vm593, %v467, 0
      %v607 = vsel %vm593, %v472, 0
      %v610 = vsel %vm593, %v475, 0
      %v613 = vsel %vm593, %v480, 0
      %v616 = vsel %vm593, %v483, 0
      %v619 = vsel %vm593, %v488, 0
      %v622 = vsel %vm593, %v491, 0
      %v625 = vsel %vm593, %v496, 0
      %v628 = vsel %vm593, %v499, 0
      %v631 = vsel %vm593, %v504, 0
      %v634 = vsel %vm593, %v507, 0
      %v637 = vsel %vm593, %v512, 0
      %v640 = vsel %vm593, %v515, 0
      %v643 = vsel %vm593, %v520, 0
      %v646 = vsel %vm593, %v523, 0
      %v649 = vsel %vm593, %v528, 0
      %v652 = vsel %vm593, %v531, 0
      %v655 = vsel %vm593, %v536, 0
      %v658 = vsel %vm593, %v539, 0
      %v661 = vsel %vm593, %v544, 0
      %v664 = vsel %vm593, %v547, 0
      %v667 = vsel %vm593, %v552, 0
      %v670 = vsel %vm593, %v555, 0
      %v673 = vsel %vm593, %v560, 0
      %v676 = vsel %vm593, %v563, 0
      %v679 = vsel %vm593, %v568, 0
      %v682 = vsel %vm593, %v571, 0
      %v685 = vsel %vm593, %v576, 0
      %v688 = vsel %vm593, %v579, 0
      %690 = vmatprep.subr.mxu0 0.0
      %691 = vmatpush1.msra.mxu0 %v582
      %692 = vmatprep.subr.mxu0 0.0
      %693 = vmatpush1.msra.mxu0 %v583
      %694 = vmatprep.subr.mxu0 0.0
      %695 = vmatpush1.msra.mxu0 %v584
      %696 = vmatprep.subr.mxu0 0.0
      %697 = vmatpush1.msra.mxu0 %v585
      %698 = vmatprep.subr.mxu0 0.0
      %699 = vmatpush1.msra.mxu0 0.0
      %700 = vmatprep.subr.mxu0 0.0
      %701 = vmatpush1.msra.mxu0 0.0
      %702 = vmatprep.subr.mxu0 0.0
      %703 = vmatpush1.msra.mxu0 0.0
      %704 = vmatprep.subr.mxu0 0.0
      %705 = vmatpush1.msra.mxu0 0.0
      %706 = vmatprep.subr.mxu0 0.0
      %707 = vmatpush1.msra.mxu0 0.0
      %708 = vmatprep.subr.mxu0 0.0
      %709 = vmatpush1.msra.mxu0 0.0
      %710 = vmatprep.subr.mxu0 0.0
      %711 = vmatpush1.msra.mxu0 0.0
      %712 = vmatprep.subr.mxu0 0.0
      %713 = vmatpush1.msra.mxu0 0.0
      %714 = vmatprep.subr.mxu0 0.0
      %715 = vmatpush1.msra.mxu0 0.0
      %716 = vmatprep.subr.mxu0 0.0
      %717 = vmatpush1.msra.mxu0 0.0
      %718 = vmatprep.subr.mxu0 0.0
      %719 = vmatpush1.msra.mxu0 0.0
      %720 = vmatprep.subr.mxu0 0.0
      %721 = vmatpush1.msra.mxu0 0.0
      %722 = vmatprep.subr.mxu0 0.0
      %723 = vmatpush1.msra.mxu0 0.0
      %724 = vmatprep.subr.mxu0 0.0
      %725 = vmatpush1.msra.mxu0 0.0
      %726 = vmatprep.subr.mxu0 0.0
      %727 = vmatpush1.msra.mxu0 0.0
      %728 = vmatprep.subr.mxu0 0.0
      %729 = vmatpush1.msra.mxu0 0.0
      %730 = vmatprep.subr.mxu0 0.0
      %731 = vmatpush1.msra.mxu0 0.0
      %732 = vmatprep.subr.mxu0 0.0
      %733 = vmatpush1.msra.mxu0 0.0
      %734 = vmatprep.subr.mxu0 0.0
      %735 = vmatpush1.msra.mxu0 0.0
      %736 = vmatprep.subr.mxu0 0.0
      %737 = vmatpush1.msra.mxu0 0.0
      %738 = vmatprep.subr.mxu0 0.0
      %739 = vmatpush1.msra.mxu0 0.0
      %740 = vmatprep.subr.mxu0 0.0
      %741 = vmatpush1.msra.mxu0 0.0
      %742 = vmatprep.subr.mxu0 0.0
      %743 = vmatpush1.msra.mxu0 0.0
      %744 = vmatprep.subr.mxu0 0.0
      %745 = vmatpush1.msra.mxu0 0.0
      %746 = vmatprep.subr.mxu0 0.0
      %747 = vmatpush1.msra.mxu0 0.0
      %748 = vmatprep.subr.mxu0 0.0
      %749 = vmatpush1.msra.mxu0 0.0
      %750 = vmatprep.subr.mxu0 0.0
      %751 = vmatpush1.msra.mxu0 0.0
      %752 = vmatprep.subr.mxu0 0.0
      %753 = vmatpush1.msra.mxu0 0.0
      %754 = vmatprep.mubr.f32.mxu0 0.0
      %755 = vmatmul.mubr.f32.gmra.mrb[0].mxu0 %v595
      %v756 = vpop.f32.mrb[0].mxu0
      %v757 = vadd.f32 %v591, %v756
      %v758 = vpop.f32.mrb[0].mxu0
      %759 = vmatprep.mubr.f32.mxu0 0.0
      %760 = vmatmul.mubr.f32.gmra.mrb[0].mxu0 %v598
      %v761 = vpop.f32.mrb[0].mxu0
      %v762 = vadd.f32 %v591, %v761
      %v763 = vpop.f32.mrb[0].mxu0
      %764 = vmatprep.mubr.f32.mxu0 0.0
      %765 = vmatmul.mubr.f32.gmra.mrb[0].mxu0 %v601
      %v766 = vpop.f32.mrb[0].mxu0
      %v767 = vadd.f32 %v591, %v766
      %v768 = vpop.f32.mrb[0].mxu0
      %769 = vmatprep.mubr.f32.mxu0 0.0
      %770 = vmatmul.mubr.f32.gmra.mrb[0].mxu0 %v604
      %v771 = vpop.f32.mrb[0].mxu0
      %v772 = vadd.f32 %v591, %v771
      %v773 = vpop.f32.mrb[0].mxu0
      %774 = vmatprep.mubr.f32.mxu0 0.0
      %775 = vmatmul.mubr.f32.gmra.mrb[0].mxu0 %v607
      %v776 = vpop.f32.mrb[0].mxu0
      %v777 = vadd.f32 %v591, %v776
      %v778 = vpop.f32.mrb[0].mxu0
      %779 = vmatprep.mubr.f32.mxu0 0.0
      %780 = vmatmul.mubr.f32.gmra.mrb[0].mxu0 %v610
      %v781 = vpop.f32.mrb[0].mxu0
      %v782 = vadd.f32 %v591, %v781
      %v783 = vpop.f32.mrb[0].mxu0
      %784 = vmatprep.mubr.f32.mxu0 0.0
      %785 = vmatmul.mubr.f32.gmra.mrb[0].mxu0 %v613
      %v786 = vpop.f32.mrb[0].mxu0
      %v787 = vadd.f32 %v591, %v786
      %v788 = vpop.f32.mrb[0].mxu0
      %789 = vmatprep.mubr.f32.mxu0 0.0
      %790 = vmatmul.mubr.f32.gmra.mrb[0].mxu0 %v616
      %v791 = vpop.f32.mrb[0].mxu0
      %v792 = vadd.f32 %v591, %v791
      %v793 = vpop.f32.mrb[0].mxu0
      %794 = vmatprep.mubr.f32.mxu0 0.0
      %795 = vmatmul.mubr.f32.gmra.mrb[0].mxu0 %v619
      %v796 = vpop.f32.mrb[0].mxu0
      %v797 = vadd.f32 %v591, %v796
      %v798 = vpop.f32.mrb[0].mxu0
      %799 = vmatprep.mubr.f32.mxu0 0.0
      %800 = vmatmul.mubr.f32.gmra.mrb[0].mxu0 %v622
      %v801 = vpop.f32.mrb[0].mxu0
      %v802 = vadd.f32 %v591, %v801
      %v803 = vpop.f32.mrb[0].mxu0
      %804 = vmatprep.mubr.f32.mxu0 0.0
      %805 = vmatmul.mubr.f32.gmra.mrb[0].mxu0 %v625
      %v806 = vpop.f32.mrb[0].mxu0
      %v807 = vadd.f32 %v591, %v806
      %v808 = vpop.f32.mrb[0].mxu0
      %809 = vmatprep.mubr.f32.mxu0 0.0
      %810 = vmatmul.mubr.f32.gmra.mrb[0].mxu0 %v628
      %v811 = vpop.f32.mrb[0].mxu0
      %v812 = vadd.f32 %v591, %v811
      %v813 = vpop.f32.mrb[0].mxu0
      %814 = vmatprep.mubr.f32.mxu0 0.0
      %815 = vmatmul.mubr.f32.gmra.mrb[0].mxu0 %v631
      %v816 = vpop.f32.mrb[0].mxu0
      %v817 = vadd.f32 %v591, %v816
      %v818 = vpop.f32.mrb[0].mxu0
      %819 = vmatprep.mubr.f32.mxu0 0.0
      %820 = vmatmul.mubr.f32.gmra.mrb[0].mxu0 %v634
      %v821 = vpop.f32.mrb[0].mxu0
      %v822 = vadd.f32 %v591, %v821
      %v823 = vpop.f32.mrb[0].mxu0
      %824 = vmatprep.mubr.f32.mxu0 0.0
      %825 = vmatmul.mubr.f32.gmra.mrb[0].mxu0 %v637
      %v826 = vpop.f32.mrb[0].mxu0
      %v827 = vadd.f32 %v591, %v826
      %v828 = vpop.f32.mrb[0].mxu0
      %829 = vmatprep.mubr.f32.mxu0 0.0
      %830 = vmatmul.mubr.f32.gmra.mrb[0].mxu0 %v640
      %v831 = vpop.f32.mrb[0].mxu0
      %v832 = vadd.f32 %v591, %v831
      %v833 = vpop.f32.mrb[0].mxu0
      %834 = vmatprep.mubr.f32.mxu0 0.0
      %835 = vmatmul.mubr.f32.gmra.mrb[0].mxu0 %v643
      %v836 = vpop.f32.mrb[0].mxu0
      %v837 = vadd.f32 %v591, %v836
      %v838 = vpop.f32.mrb[0].mxu0
      %839 = vmatprep.mubr.f32.mxu0 0.0
      %840 = vmatmul.mubr.f32.gmra.mrb[0].mxu0 %v646
      %v841 = vpop.f32.mrb[0].mxu0
      %v842 = vadd.f32 %v591, %v841
      %v843 = vpop.f32.mrb[0].mxu0
      %844 = vmatprep.mubr.f32.mxu0 0.0
      %845 = vmatmul.mubr.f32.gmra.mrb[0].mxu0 %v649
      %v846 = vpop.f32.mrb[0].mxu0
      %v847 = vadd.f32 %v591, %v846
      %v848 = vpop.f32.mrb[0].mxu0
      %849 = vmatprep.mubr.f32.mxu0 0.0
      %850 = vmatmul.mubr.f32.gmra.mrb[0].mxu0 %v652
      %v851 = vpop.f32.mrb[0].mxu0
      %v852 = vadd.f32 %v591, %v851
      %v853 = vpop.f32.mrb[0].mxu0
      %854 = vmatprep.mubr.f32.mxu0 0.0
      %855 = vmatmul.mubr.f32.gmra.mrb[0].mxu0 %v655
      %v856 = vpop.f32.mrb[0].mxu0
      %v857 = vadd.f32 %v591, %v856
      %v858 = vpop.f32.mrb[0].mxu0
      %859 = vmatprep.mubr.f32.mxu0 0.0
      %860 = vmatmul.mubr.f32.gmra.mrb[0].mxu0 %v658
      %v861 = vpop.f32.mrb[0].mxu0
      %v862 = vadd.f32 %v591, %v861
      %v863 = vpop.f32.mrb[0].mxu0
      %864 = vmatprep.mubr.f32.mxu0 0.0
      %865 = vmatmul.mubr.f32.gmra.mrb[0].mxu0 %v661
      %v866 = vpop.f32.mrb[0].mxu0
      %v867 = vadd.f32 %v591, %v866
      %v868 = vpop.f32.mrb[0].mxu0
      %869 = vmatprep.mubr.f32.mxu0 0.0
      %870 = vmatmul.mubr.f32.gmra.mrb[0].mxu0 %v664
      %v871 = vpop.f32.mrb[0].mxu0
      %v872 = vadd.f32 %v591, %v871
      %v873 = vpop.f32.mrb[0].mxu0
      %874 = vmatprep.mubr.f32.mxu0 0.0
      %875 = vmatmul.mubr.f32.gmra.mrb[0].mxu0 %v667
      %v876 = vpop.f32.mrb[0].mxu0
      %v877 = vadd.f32 %v591, %v876
      %v878 = vpop.f32.mrb[0].mxu0
      %879 = vmatprep.mubr.f32.mxu0 0.0
      %880 = vmatmul.mubr.f32.gmra.mrb[0].mxu0 %v670
      %v881 = vpop.f32.mrb[0].mxu0
      %v882 = vadd.f32 %v591, %v881
      %v883 = vpop.f32.mrb[0].mxu0
      %884 = vmatprep.mubr.f32.mxu0 0.0
      %885 = vmatmul.mubr.f32.gmra.mrb[0].mxu0 %v673
      %v886 = vpop.f32.mrb[0].mxu0
      %v887 = vadd.f32 %v591, %v886
      %v888 = vpop.f32.mrb[0].mxu0
      %889 = vmatprep.mubr.f32.mxu0 0.0
      %890 = vmatmul.mubr.f32.gmra.mrb[0].mxu0 %v676
      %v891 = vpop.f32.mrb[0].mxu0
      %v892 = vadd.f32 %v591, %v891
      %v893 = vpop.f32.mrb[0].mxu0
      %894 = vmatprep.mubr.f32.mxu0 0.0
      %895 = vmatmul.mubr.f32.gmra.mrb[0].mxu0 %v679
      %v896 = vpop.f32.mrb[0].mxu0
      %v897 = vadd.f32 %v591, %v896
      %v898 = vpop.f32.mrb[0].mxu0
      %899 = vmatprep.mubr.f32.mxu0 0.0
      %900 = vmatmul.mubr.f32.gmra.mrb[0].mxu0 %v682
      %v901 = vpop.f32.mrb[0].mxu0
      %v902 = vadd.f32 %v591, %v901
      %v903 = vpop.f32.mrb[0].mxu0
      %904 = vmatprep.mubr.f32.mxu0 0.0
      %905 = vmatmul.mubr.f32.gmra.mrb[0].mxu0 %v685
      %v906 = vpop.f32.mrb[0].mxu0
      %v907 = vadd.f32 %v591, %v906
      %v908 = vpop.f32.mrb[0].mxu0
      %909 = vmatprep.mubr.f32.mxu0 0.0
      %910 = vmatmul.mubr.f32.gmra.mrb[0].mxu0 %v688
      %v911 = vpop.f32.mrb[0].mxu0
      %v912 = vadd.f32 %v591, %v911
      %v913 = vpop.f32.mrb[0].mxu0
      %914 = vdwg.mxu0
      %915 = vmax.xlane.f32.xlu0 %v757
      %v916 = vpop.xlane.xlu0 %915
      %917 = vmax.xlane.f32.xlu0 %v762
      %v918 = vpop.xlane.xlu0 %917
      %919 = vmax.xlane.f32.xlu0 %v767
      %v920 = vpop.xlane.xlu0 %919
      %921 = vmax.xlane.f32.xlu0 %v772
      %v922 = vpop.xlane.xlu0 %921
      %923 = vmax.xlane.f32.xlu0 %v777
      %v924 = vpop.xlane.xlu0 %923
      %925 = vmax.xlane.f32.xlu0 %v782
      %v926 = vpop.xlane.xlu0 %925
      %927 = vmax.xlane.f32.xlu0 %v787
      %v928 = vpop.xlane.xlu0 %927
      %929 = vmax.xlane.f32.xlu0 %v792
      %v930 = vpop.xlane.xlu0 %929
      %931 = vmax.xlane.f32.xlu0 %v797
      %v932 = vpop.xlane.xlu0 %931
      %933 = vmax.xlane.f32.xlu0 %v802
      %v934 = vpop.xlane.xlu0 %933
      %935 = vmax.xlane.f32.xlu0 %v807
      %v936 = vpop.xlane.xlu0 %935
      %937 = vmax.xlane.f32.xlu0 %v812
      %v938 = vpop.xlane.xlu0 %937
      %939 = vmax.xlane.f32.xlu0 %v817
      %v940 = vpop.xlane.xlu0 %939
      %941 = vmax.xlane.f32.xlu0 %v822
      %v942 = vpop.xlane.xlu0 %941
      %943 = vmax.xlane.f32.xlu0 %v827
      %v944 = vpop.xlane.xlu0 %943
      %945 = vmax.xlane.f32.xlu0 %v832
      %v946 = vpop.xlane.xlu0 %945
      %947 = vmax.xlane.f32.xlu0 %v837
      %v948 = vpop.xlane.xlu0 %947
      %949 = vmax.xlane.f32.xlu0 %v842
      %v950 = vpop.xlane.xlu0 %949
      %951 = vmax.xlane.f32.xlu0 %v847
      %v952 = vpop.xlane.xlu0 %951
      %953 = vmax.xlane.f32.xlu0 %v852
      %v954 = vpop.xlane.xlu0 %953
      %955 = vmax.xlane.f32.xlu0 %v857
      %v956 = vpop.xlane.xlu0 %955
      %957 = vmax.xlane.f32.xlu0 %v862
      %v958 = vpop.xlane.xlu0 %957
      %959 = vmax.xlane.f32.xlu0 %v867
      %v960 = vpop.xlane.xlu0 %959
      %961 = vmax.xlane.f32.xlu0 %v872
      %v962 = vpop.xlane.xlu0 %961
      %963 = vmax.xlane.f32.xlu0 %v877
      %v964 = vpop.xlane.xlu0 %963
      %965 = vmax.xlane.f32.xlu0 %v882
      %v966 = vpop.xlane.xlu0 %965
      %967 = vmax.xlane.f32.xlu0 %v887
      %v968 = vpop.xlane.xlu0 %967
      %969 = vmax.xlane.f32.xlu0 %v892
      %v970 = vpop.xlane.xlu0 %969
      %971 = vmax.xlane.f32.xlu0 %v897
      %v972 = vpop.xlane.xlu0 %971
      %973 = vmax.xlane.f32.xlu0 %v902
      %v974 = vpop.xlane.xlu0 %973
      %975 = vmax.xlane.f32.xlu0 %v907
      %v976 = vpop.xlane.xlu0 %975
      %977 = vmax.xlane.f32.xlu0 %v912
      %v978 = vpop.xlane.xlu0 %977
      %v979 = vsub.f32 %v757, %v916
      %v980 = vsub.f32 %v762, %v918
      %v981 = vsub.f32 %v767, %v920
      %v982 = vsub.f32 %v772, %v922
      %v983 = vsub.f32 %v777, %v924
      %v984 = vsub.f32 %v782, %v926
      %v985 = vsub.f32 %v787, %v928
      %v986 = vsub.f32 %v792, %v930
      %v987 = vsub.f32 %v797, %v932
      %v988 = vsub.f32 %v802, %v934
      %v989 = vsub.f32 %v807, %v936
      %v990 = vsub.f32 %v812, %v938
      %v991 = vsub.f32 %v817, %v940
      %v992 = vsub.f32 %v822, %v942
      %v993 = vsub.f32 %v827, %v944
      %v994 = vsub.f32 %v832, %v946
      %v995 = vsub.f32 %v837, %v948
      %v996 = vsub.f32 %v842, %v950
      %v997 = vsub.f32 %v847, %v952
      %v998 = vsub.f32 %v852, %v954
      %v999 = vsub.f32 %v857, %v956
      %v1000 = vsub.f32 %v862, %v958
      %v1001 = vsub.f32 %v867, %v960
      %v1002 = vsub.f32 %v872, %v962
      %v1003 = vsub.f32 %v877, %v964
      %v1004 = vsub.f32 %v882, %v966
      %v1005 = vsub.f32 %v887, %v968
      %v1006 = vsub.f32 %v892, %v970
      %v1007 = vsub.f32 %v897, %v972
      %v1008 = vsub.f32 %v902, %v974
      %v1009 = vsub.f32 %v907, %v976
      %v1010 = vsub.f32 %v912, %v978
      %v1011 = vmul.f32 %v979, 1.442695
      %v1012 = vpow.pop %v1011
      %v1013 = vmul.f32 %v980, 1.442695
      %v1014 = vpow.pop %v1013
      %v1015 = vmul.f32 %v981, 1.442695
      %v1016 = vpow.pop %v1015
      %v1017 = vmul.f32 %v982, 1.442695
      %v1018 = vpow.pop %v1017
      %v1019 = vmul.f32 %v983, 1.442695
      %v1020 = vpow.pop %v1019
      %v1021 = vmul.f32 %v984, 1.442695
      %v1022 = vpow.pop %v1021
      %v1023 = vmul.f32 %v985, 1.442695
      %v1024 = vpow.pop %v1023
      %v1025 = vmul.f32 %v986, 1.442695
      %v1026 = vpow.pop %v1025
      %v1027 = vmul.f32 %v987, 1.442695
      %v1028 = vpow.pop %v1027
      %v1029 = vmul.f32 %v988, 1.442695
      %v1030 = vpow.pop %v1029
      %v1031 = vmul.f32 %v989, 1.442695
      %v1032 = vpow.pop %v1031
      %v1033 = vmul.f32 %v990, 1.442695
      %v1034 = vpow.pop %v1033
      %v1035 = vmul.f32 %v991, 1.442695
      %v1036 = vpow.pop %v1035
      %v1037 = vmul.f32 %v992, 1.442695
      %v1038 = vpow.pop %v1037
      %v1039 = vmul.f32 %v993, 1.442695
      %v1040 = vpow.pop %v1039
      %v1041 = vmul.f32 %v994, 1.442695
      %v1042 = vpow.pop %v1041
      %v1043 = vmul.f32 %v995, 1.442695
      %v1044 = vpow.pop %v1043
      %v1045 = vmul.f32 %v996, 1.442695
      %v1046 = vpow.pop %v1045
      %v1047 = vmul.f32 %v997, 1.442695
      %v1048 = vpow.pop %v1047
      %v1049 = vmul.f32 %v998, 1.442695
      %v1050 = vpow.pop %v1049
      %v1051 = vmul.f32 %v999, 1.442695
      %v1052 = vpow.pop %v1051
      %v1053 = vmul.f32 %v1000, 1.442695
      %v1054 = vpow.pop %v1053
      %v1055 = vmul.f32 %v1001, 1.442695
      %v1056 = vpow.pop %v1055
      %v1057 = vmul.f32 %v1002, 1.442695
      %v1058 = vpow.pop %v1057
      %v1059 = vmul.f32 %v1003, 1.442695
      %v1060 = vpow.pop %v1059
      %v1061 = vmul.f32 %v1004, 1.442695
      %v1062 = vpow.pop %v1061
      %v1063 = vmul.f32 %v1005, 1.442695
      %v1064 = vpow.pop %v1063
      %v1065 = vmul.f32 %v1006, 1.442695
      %v1066 = vpow.pop %v1065
      %v1067 = vmul.f32 %v1007, 1.442695
      %v1068 = vpow.pop %v1067
      %v1069 = vmul.f32 %v1008, 1.442695
      %v1070 = vpow.pop %v1069
      %v1071 = vmul.f32 %v1009, 1.442695
      %v1072 = vpow.pop %v1071
      %v1073 = vmul.f32 %v1010, 1.442695
      %v1074 = vpow.pop %v1073
      %1075 = vadd.xlane.f32.xlu0 %v1012
      %v1076 = vpop.xlane.xlu0 %1075
      %1077 = vadd.xlane.f32.xlu0 %v1014
      %v1078 = vpop.xlane.xlu0 %1077
      %1079 = vadd.xlane.f32.xlu0 %v1016
      %v1080 = vpop.xlane.xlu0 %1079
      %1081 = vadd.xlane.f32.xlu0 %v1018
      %v1082 = vpop.xlane.xlu0 %1081
      %1083 = vadd.xlane.f32.xlu0 %v1020
      %v1084 = vpop.xlane.xlu0 %1083
      %1085 = vadd.xlane.f32.xlu0 %v1022
      %v1086 = vpop.xlane.xlu0 %1085
      %1087 = vadd.xlane.f32.xlu0 %v1024
      %v1088 = vpop.xlane.xlu0 %1087
      %1089 = vadd.xlane.f32.xlu0 %v1026
      %v1090 = vpop.xlane.xlu0 %1089
      %1091 = vadd.xlane.f32.xlu0 %v1028
      %v1092 = vpop.xlane.xlu0 %1091
      %1093 = vadd.xlane.f32.xlu0 %v1030
      %v1094 = vpop.xlane.xlu0 %1093
      %1095 = vadd.xlane.f32.xlu0 %v1032
      %v1096 = vpop.xlane.xlu0 %1095
      %1097 = vadd.xlane.f32.xlu0 %v1034
      %v1098 = vpop.xlane.xlu0 %1097
      %1099 = vadd.xlane.f32.xlu0 %v1036
      %v1100 = vpop.xlane.xlu0 %1099
      %1101 = vadd.xlane.f32.xlu0 %v1038
      %v1102 = vpop.xlane.xlu0 %1101
      %1103 = vadd.xlane.f32.xlu0 %v1040
      %v1104 = vpop.xlane.xlu0 %1103
      %1105 = vadd.xlane.f32.xlu0 %v1042
      %v1106 = vpop.xlane.xlu0 %1105
      %1107 = vadd.xlane.f32.xlu0 %v1044
      %v1108 = vpop.xlane.xlu0 %1107
      %1109 = vadd.xlane.f32.xlu0 %v1046
      %v1110 = vpop.xlane.xlu0 %1109
      %1111 = vadd.xlane.f32.xlu0 %v1048
      %v1112 = vpop.xlane.xlu0 %1111
      %1113 = vadd.xlane.f32.xlu0 %v1050
      %v1114 = vpop.xlane.xlu0 %1113
      %1115 = vadd.xlane.f32.xlu0 %v1052
      %v1116 = vpop.xlane.xlu0 %1115
      %1117 = vadd.xlane.f32.xlu0 %v1054
      %v1118 = vpop.xlane.xlu0 %1117
      %1119 = vadd.xlane.f32.xlu0 %v1056
      %v1120 = vpop.xlane.xlu0 %1119
      %1121 = vadd.xlane.f32.xlu0 %v1058
      %v1122 = vpop.xlane.xlu0 %1121
      %1123 = vadd.xlane.f32.xlu0 %v1060
      %v1124 = vpop.xlane.xlu0 %1123
      %1125 = vadd.xlane.f32.xlu0 %v1062
      %v1126 = vpop.xlane.xlu0 %1125
      %1127 = vadd.xlane.f32.xlu0 %v1064
      %v1128 = vpop.xlane.xlu0 %1127
      %1129 = vadd.xlane.f32.xlu0 %v1066
      %v1130 = vpop.xlane.xlu0 %1129
      %1131 = vadd.xlane.f32.xlu0 %v1068
      %v1132 = vpop.xlane.xlu0 %1131
      %1133 = vadd.xlane.f32.xlu0 %v1070
      %v1134 = vpop.xlane.xlu0 %1133
      %1135 = vadd.xlane.f32.xlu0 %v1072
      %v1136 = vpop.xlane.xlu0 %1135
      %1137 = vadd.xlane.f32.xlu0 %v1074
      %v1138 = vpop.xlane.xlu0 %1137
      %v1139 = vlog2.pop %v1076
      %v1140 = vmul.f32 %v1139, 0.6931472
      %v1141 = vlog2.pop %v1078
      %v1142 = vmul.f32 %v1141, 0.6931472
      %v1143 = vlog2.pop %v1080
      %v1144 = vmul.f32 %v1143, 0.6931472
      %v1145 = vlog2.pop %v1082
      %v1146 = vmul.f32 %v1145, 0.6931472
      %v1147 = vlog2.pop %v1084
      %v1148 = vmul.f32 %v1147, 0.6931472
      %v1149 = vlog2.pop %v1086
      %v1150 = vmul.f32 %v1149, 0.6931472
      %v1151 = vlog2.pop %v1088
      %v1152 = vmul.f32 %v1151, 0.6931472
      %v1153 = vlog2.pop %v1090
      %v1154 = vmul.f32 %v1153, 0.6931472
      %v1155 = vlog2.pop %v1092
      %v1156 = vmul.f32 %v1155, 0.6931472
      %v1157 = vlog2.pop %v1094
      %v1158 = vmul.f32 %v1157, 0.6931472
      %v1159 = vlog2.pop %v1096
      %v1160 = vmul.f32 %v1159, 0.6931472
      %v1161 = vlog2.pop %v1098
      %v1162 = vmul.f32 %v1161, 0.6931472
      %v1163 = vlog2.pop %v1100
      %v1164 = vmul.f32 %v1163, 0.6931472
      %v1165 = vlog2.pop %v1102
      %v1166 = vmul.f32 %v1165, 0.6931472
      %v1167 = vlog2.pop %v1104
      %v1168 = vmul.f32 %v1167, 0.6931472
      %v1169 = vlog2.pop %v1106
      %v1170 = vmul.f32 %v1169, 0.6931472
      %v1171 = vlog2.pop %v1108
      %v1172 = vmul.f32 %v1171, 0.6931472
      %v1173 = vlog2.pop %v1110
      %v1174 = vmul.f32 %v1173, 0.6931472
      %v1175 = vlog2.pop %v1112
      %v1176 = vmul.f32 %v1175, 0.6931472
      %v1177 = vlog2.pop %v1114
      %v1178 = vmul.f32 %v1177, 0.6931472
      %v1179 = vlog2.pop %v1116
      %v1180 = vmul.f32 %v1179, 0.6931472
      %v1181 = vlog2.pop %v1118
      %v1182 = vmul.f32 %v1181, 0.6931472
      %v1183 = vlog2.pop %v1120
      %v1184 = vmul.f32 %v1183, 0.6931472
      %v1185 = vlog2.pop %v1122
      %v1186 = vmul.f32 %v1185, 0.6931472
      %v1187 = vlog2.pop %v1124
      %v1188 = vmul.f32 %v1187, 0.6931472
      %v1189 = vlog2.pop %v1126
      %v1190 = vmul.f32 %v1189, 0.6931472
      %v1191 = vlog2.pop %v1128
      %v1192 = vmul.f32 %v1191, 0.6931472
      %v1193 = vlog2.pop %v1130
      %v1194 = vmul.f32 %v1193, 0.6931472
      %v1195 = vlog2.pop %v1132
      %v1196 = vmul.f32 %v1195, 0.6931472
      %v1197 = vlog2.pop %v1134
      %v1198 = vmul.f32 %v1197, 0.6931472
      %v1199 = vlog2.pop %v1136
      %v1200 = vmul.f32 %v1199, 0.6931472
      %v1201 = vlog2.pop %v1138
      %v1202 = vmul.f32 %v1201, 0.6931472
      %v1203 = vsub.f32 %v979, %v1140
      %v1204 = vsub.f32 %v980, %v1142
      %v1205 = vsub.f32 %v981, %v1144
      %v1206 = vsub.f32 %v982, %v1146
      %v1207 = vsub.f32 %v983, %v1148
      %v1208 = vsub.f32 %v984, %v1150
      %v1209 = vsub.f32 %v985, %v1152
      %v1210 = vsub.f32 %v986, %v1154
      %v1211 = vsub.f32 %v987, %v1156
      %v1212 = vsub.f32 %v988, %v1158
      %v1213 = vsub.f32 %v989, %v1160
      %v1214 = vsub.f32 %v990, %v1162
      %v1215 = vsub.f32 %v991, %v1164
      %v1216 = vsub.f32 %v992, %v1166
      %v1217 = vsub.f32 %v993, %v1168
      %v1218 = vsub.f32 %v994, %v1170
      %v1219 = vsub.f32 %v995, %v1172
      %v1220 = vsub.f32 %v996, %v1174
      %v1221 = vsub.f32 %v997, %v1176
      %v1222 = vsub.f32 %v998, %v1178
      %v1223 = vsub.f32 %v999, %v1180
      %v1224 = vsub.f32 %v1000, %v1182
      %v1225 = vsub.f32 %v1001, %v1184
      %v1226 = vsub.f32 %v1002, %v1186
      %v1227 = vsub.f32 %v1003, %v1188
      %v1228 = vsub.f32 %v1004, %v1190
      %v1229 = vsub.f32 %v1005, %v1192
      %v1230 = vsub.f32 %v1006, %v1194
      %v1231 = vsub.f32 %v1007, %v1196
      %v1232 = vsub.f32 %v1008, %v1198
      %v1233 = vsub.f32 %v1009, %v1200
      %v1234 = vsub.f32 %v1010, %v1202
      %1235 = vst [vmem:[%s226] sm:$0xff] %v1203
      %1236 = vst [vmem:[%s226 + $0x8] sm:$0xff] %v1204
      %1237 = vst [vmem:[%s226 + $0x10] sm:$0xff] %v1205
      %1238 = vst [vmem:[%s226 + $0x18] sm:$0xff] %v1206
      %1239 = vst [vmem:[%s226 + $0x20] sm:$0xff] %v1207
      %1240 = vst [vmem:[%s226 + $0x28] sm:$0xff] %v1208
      %1241 = vst [vmem:[%s226 + $0x30] sm:$0xff] %v1209
      %1242 = vst [vmem:[%s226 + $0x38] sm:$0xff] %v1210
      %1243 = vst [vmem:[%s226 + $0x40] sm:$0xff] %v1211
      %1244 = vst [vmem:[%s226 + $0x48] sm:$0xff] %v1212
      %1245 = vst [vmem:[%s226 + $0x50] sm:$0xff] %v1213
      %1246 = vst [vmem:[%s226 + $0x58] sm:$0xff] %v1214
      %1247 = vst [vmem:[%s226 + $0x60] sm:$0xff] %v1215
      %1248 = vst [vmem:[%s226 + $0x68] sm:$0xff] %v1216
      %1249 = vst [vmem:[%s226 + $0x70] sm:$0xff] %v1217
      %1250 = vst [vmem:[%s226 + $0x78] sm:$0xff] %v1218
      %1251 = vst [vmem:[%s226 + $0x80] sm:$0xff] %v1219
      %1252 = vst [vmem:[%s226 + $0x88] sm:$0xff] %v1220
      %1253 = vst [vmem:[%s226 + $0x90] sm:$0xff] %v1221
      %1254 = vst [vmem:[%s226 + $0x98] sm:$0xff] %v1222
      %1255 = vst [vmem:[%s226 + $0xa0] sm:$0xff] %v1223
      %1256 = vst [vmem:[%s226 + $0xa8] sm:$0xff] %v1224
      %1257 = vst [vmem:[%s226 + $0xb0] sm:$0xff] %v1225
      %1258 = vst [vmem:[%s226 + $0xb8] sm:$0xff] %v1226
      %1259 = vst [vmem:[%s226 + $0xc0] sm:$0xff] %v1227
      %1260 = vst [vmem:[%s226 + $0xc8] sm:$0xff] %v1228
      %1261 = vst [vmem:[%s226 + $0xd0] sm:$0xff] %v1229
      %1262 = vst [vmem:[%s226 + $0xd8] sm:$0xff] %v1230
      %1263 = vst [vmem:[%s226 + $0xe0] sm:$0xff] %v1231
      %1264 = vst [vmem:[%s226 + $0xe8] sm:$0xff] %v1232
      %1265 = vst [vmem:[%s226 + $0xf0] sm:$0xff] %v1233
      %1266 = vst [vmem:[%s226 + $0xf8] sm:$0xff] %v1234
      %s1267 = smul.u32 32, %s16
      %p1268 = scmp.lt.s32.totalorder %s1267, 63
      %s1269 = scalar_select %p1268, %s1267, 63
      %s1270 = smul.addr %s1269, 8
      %s1271 = scalar_lea.vmem %s5, %s1270
      // Predicated region
      $region41: #{graphconv_forward.3} parent=39 // pred_check
        %p1272 = pneg %p144
      $region42: #{graphconv_forward.3} parent=39 // pred_check_branch
        %1274 = sbr.rel (%p1272) target = $region44
      $region43: #{graphconv_forward.3} parent=39 // pred_region
        %s1275 = smul.u32 32, %s16
      $region44: #{graphconv_forward.3} parent=39 // pred_fallthru
        _
    $region40: #{graphconv_forward.3} parent=5 // pred_fallthru
      _
    %p1276 = scmp.le.s32.totalorder 2, %s11
    // Predicated region
    $region45: #{graphconv_forward.3} parent=5 // pred_check
      %p1277 = pneg %p1276
    $region46: #{graphconv_forward.3} parent=5 // pred_check_branch
      %1279 = sbr.rel (%p1277) target = $region48
    $region47: #{graphconv_forward.3} parent=5 // pred_region
      %s1280 = ssub.s32 %s11, 2
      // Predicated region
      $region49: #{graphconv_forward.3} parent=47 // pred_check
        %p1281 = pneg %p150
      $region50: #{graphconv_forward.3} parent=47 // pred_check_branch
        %1283 = sbr.rel (%p1281) target = $region52
      $region51: #{graphconv_forward.3} parent=47 // pred_region
        %s1284 = smul.u32 32, %s17
        %p1285 = scmp.lt.s32.totalorder %s1284, 63
        %s1286 = scalar_select %p1285, %s1284, 63
        %s1287 = smul.addr %s1286, 8
        %s1288 = scalar_lea.vmem %s5, %s1287
      $region52: #{graphconv_forward.3} parent=47 // pred_fallthru
        _
    $region48: #{graphconv_forward.3} parent=5 // pred_fallthru
      _
  $region6: #{graphconv_forward.3} parent=0 // loop_footer
    %s15 = sadd.s32 1, %s11
  $region7: #{graphconv_forward.3} parent=0 // loop_footer_branch
    %10 = sbr.rel target = $region3
  $region8: #{graphconv_forward.3} parent=0 // loop_exit
    _

// kernel: graphconv_forward.2
$region0: #{graphconv_forward.2}
  #allocation0 [shape = 'u32[]', space=smem, size = 0x4, offset = 0x4, fixed_abs, tag = 'smem constant byte address 0x4 - core index']
  #allocation1 [shape = 'u32[144,128]{1,0:T(1,128)}', space=vmem, size = 0x12000, scoped, tag = 'internal scratch']
  #allocation2 [shape = 'f32[32,32]{1,0:T(8,128)}', space=vmem, size = 0x4000, scoped, tag = 'scratch operand']
  %s0 = inlined_call_operand.vmem [shape: bf16[512,48], index: 0, kind: input, shape index: {}]
  %s1 = inlined_call_operand.vmem [shape: bf16[48,32], index: 1, kind: input, shape index: {}]
  %s2 = inlined_call_operand.vmem [shape: f32[1,32], index: 2, kind: input, shape index: {}]
  %s3 = inlined_call_operand.vmem [shape: f32[32,32], index: 3, kind: output, shape index: {}]
  %s4 = sld [smem:[#allocation0]]
  $region53: #{graphconv_forward.2} parent=0
    _
  %s6 = ssub.s32 1, %s4
  %s7 = scalar_select 0, %s6, %s4
  loop: start=0, step=1, limit=4
  $region2: #{graphconv_forward.2} parent=0 // loop_pre_header
    _
  $region3: #{graphconv_forward.2} parent=0 // loop_header
    %s9 = sphi 0, %s13
    %p10 = scmp.ge.s32.totalorder %s9, 4
    %s19 = sphi 0, %s21
    %s22 = sphi 0, %s19
    %s23 = sphi 0, %s22
    %s39 = sphi 0, %s23
    %s43 = sphi 0, %s43
    %s45 = sphi 0, %s43
    %s46 = sphi 0, %s45
    %s60 = sphi 0, %s46
    %s64 = sphi 0, %s64
    %s66 = sphi 0, %s64
    %s67 = sphi 0, %s66
    %s81 = sphi 0, %s67
    %s85 = sphi 0, %s85
    %s87 = sphi 0, %s85
    %s88 = sphi 0, %s87
    %s102 = sphi 0, %s88
  $region4: #{graphconv_forward.2} parent=0 // loop_header_branch
    %12 = sbr.rel (%p10) target = $region8
  $region5: #{graphconv_forward.2} parent=0 // loop_body
    %s14 = ssub.s32 %s9, 1
    %s15 = ssub.s32 %s9, 2
    %s16 = sadd.s32 %s9, 1
    %s17 = ssub.s32 %s9, %s16
    %p18 = scmp.eq.s32.totalorder %s17, 0
    %s20 = sadd.s32 %s19, 1
    %s21 = scalar_select %p18, %s19, %s20
    %p24 = pneg %p18
    %p25 = scmp.eq.s32.totalorder %s9, 1
    %p26 = por %p24, %p25
    %p27 = scmp.ne.s32.totalorder %s19, %s22
    %p28 = scmp.eq.s32.totalorder %s9, 0
    %p29 = por %p27, %p28
    %p30 = scmp.ne.s32.totalorder %s19, %s22
    %p31 = scmp.eq.s32.totalorder %s14, 1
    %p32 = por %p30, %p31
    %p33 = scmp.ne.s32.totalorder %s22, %s23
    %p34 = scmp.eq.s32.totalorder %s14, 0
    %p35 = por %p33, %p34
    %p36 = scmp.ne.s32.totalorder %s22, %s23
    %p37 = scmp.eq.s32.totalorder %s15, 1
    %p38 = por %p36, %p37
    %p40 = scmp.ne.s32.totalorder %s23, %s39
    %p41 = scmp.eq.s32.totalorder %s15, 0
    %p42 = por %p40, %p41
    %s44 = sadd.s32 %s43, 1
    %p47 = scmp.eq.s32.totalorder %s9, 1
    %p48 = scmp.ne.s32.totalorder %s43, %s45
    %p49 = scmp.eq.s32.totalorder %s9, 0
    %p50 = por %p48, %p49
    %p51 = scmp.ne.s32.totalorder %s43, %s45
    %p52 = scmp.eq.s32.totalorder %s14, 1
    %p53 = por %p51, %p52
    %p54 = scmp.ne.s32.totalorder %s45, %s46
    %p55 = scmp.eq.s32.totalorder %s14, 0
    %p56 = por %p54, %p55
    %p57 = scmp.ne.s32.totalorder %s45, %s46
    %p58 = scmp.eq.s32.totalorder %s15, 1
    %p59 = por %p57, %p58
    %p61 = scmp.ne.s32.totalorder %s46, %s60
    %p62 = scmp.eq.s32.totalorder %s15, 0
    %p63 = por %p61, %p62
    %s65 = sadd.s32 %s64, 1
    %p68 = scmp.eq.s32.totalorder %s9, 1
    %p69 = scmp.ne.s32.totalorder %s64, %s66
    %p70 = scmp.eq.s32.totalorder %s9, 0
    %p71 = por %p69, %p70
    %p72 = scmp.ne.s32.totalorder %s64, %s66
    %p73 = scmp.eq.s32.totalorder %s14, 1
    %p74 = por %p72, %p73
    %p75 = scmp.ne.s32.totalorder %s66, %s67
    %p76 = scmp.eq.s32.totalorder %s14, 0
    %p77 = por %p75, %p76
    %p78 = scmp.ne.s32.totalorder %s66, %s67
    %p79 = scmp.eq.s32.totalorder %s15, 1
    %p80 = por %p78, %p79
    %p82 = scmp.ne.s32.totalorder %s67, %s81
    %p83 = scmp.eq.s32.totalorder %s15, 0
    %p84 = por %p82, %p83
    %s86 = sadd.s32 %s85, 1
    %p89 = scmp.eq.s32.totalorder %s9, 1
    %p90 = scmp.ne.s32.totalorder %s85, %s87
    %p91 = scmp.eq.s32.totalorder %s9, 0
    %p92 = por %p90, %p91
    %p93 = scmp.ne.s32.totalorder %s85, %s87
    %p94 = scmp.eq.s32.totalorder %s14, 1
    %p95 = por %p93, %p94
    %p96 = scmp.ne.s32.totalorder %s87, %s88
    %p97 = scmp.eq.s32.totalorder %s14, 0
    %p98 = por %p96, %p97
    %p99 = scmp.ne.s32.totalorder %s87, %s88
    %p100 = scmp.eq.s32.totalorder %s15, 1
    %p101 = por %p99, %p100
    %p103 = scmp.ne.s32.totalorder %s88, %s102
    %p104 = scmp.eq.s32.totalorder %s15, 0
    %p105 = por %p103, %p104
    %p106 = scmp.le.s32.totalorder 1, %s9
    %p107 = scmp.lt.s32.totalorder %s9, 3
    %p108 = pnand %p106, %p107
    %p109 = pneg %p108
    // Predicated region
    $region9: #{graphconv_forward.2} parent=5 // pred_check
      _
    $region10: #{graphconv_forward.2} parent=5 // pred_check_branch
      %111 = sbr.rel (%p108) target = $region12
    $region11: #{graphconv_forward.2} parent=5 // pred_region
      %s112 = ssub.s32 %s9, 1
      // Predicated region
      $region13: #{graphconv_forward.2} parent=11 // pred_check
        %p113 = pneg %p56
      $region14: #{graphconv_forward.2} parent=11 // pred_check_branch
        %115 = sbr.rel (%p113) target = $region16
      $region15: #{graphconv_forward.2} parent=11 // pred_region
        _
      $region16: #{graphconv_forward.2} parent=11 // pred_fallthru
        _
      // Predicated region
      $region17: #{graphconv_forward.2} parent=11 // pred_check
        %p116 = pneg %p77
      $region18: #{graphconv_forward.2} parent=11 // pred_check_branch
        %118 = sbr.rel (%p116) target = $region20
      $region19: #{graphconv_forward.2} parent=11 // pred_region
        _
      $region20: #{graphconv_forward.2} parent=11 // pred_fallthru
        _
    $region12: #{graphconv_forward.2} parent=5 // pred_fallthru
      _
    %p119 = scmp.lt.s32.totalorder %s9, 2
    // Predicated region
    $region21: #{graphconv_forward.2} parent=5 // pred_check
      %p120 = pneg %p119
    $region22: #{graphconv_forward.2} parent=5 // pred_check_branch
      %122 = sbr.rel (%p120) target = $region24
    $region23: #{graphconv_forward.2} parent=5 // pred_region
      // Predicated region
      $region25: #{graphconv_forward.2} parent=23 // pred_check
        %p123 = pneg %p29
      $region26: #{graphconv_forward.2} parent=23 // pred_check_branch
        %125 = sbr.rel (%p123) target = $region28
      $region27: #{graphconv_forward.2} parent=23 // pred_region
        %s126 = smul.u32 32, %s9
        %p127 = scmp.lt.s32.totalorder %s126, 63
        %s128 = scalar_select %p127, %s126, 63
        %s129 = smul.addr %s128, 4
        %s130 = scalar_lea.vmem %s0, %s129
        %s131 = smul.u32 32, %s9
      $region28: #{graphconv_forward.2} parent=23 // pred_fallthru
        _
    $region24: #{graphconv_forward.2} parent=5 // pred_fallthru
      _
    %p132 = scmp.le.s32.totalorder 1, %s9
    %p133 = scmp.lt.s32.totalorder %s9, 3
    %p134 = pnand %p132, %p133
    %p135 = pneg %p134
    // Predicated region
    $region29: #{graphconv_forward.2} parent=5 // pred_check
      _
    $region30: #{graphconv_forward.2} parent=5 // pred_check_branch
      %137 = sbr.rel (%p134) target = $region32
    $region31: #{graphconv_forward.2} parent=5 // pred_region
      %s138 = ssub.s32 %s9, 1
      %s139 = smul.u32 32, %s14
      %p140 = scmp.lt.s32.totalorder %s139, 63
      %s141 = scalar_select %p140, %s139, 63
      %s142 = smul.addr %s141, 4
      %s143 = scalar_lea.vmem %s0, %s142
      %p144 = pneg %p35
      %p145 = pneg %p32
      %p146 = pneg %p56
      %p147 = pneg %p53
      %p148 = pneg %p77
      %p149 = pneg %p74
      %p150 = pneg %p98
      %p151 = pneg %p95
      %s152 = smul.u32 32, %s14
      %p153 = scmp.lt.s32.totalorder %s152, 63
      %s154 = scalar_select %p153, %s152, 63
      %s155 = smul.addr %s154, 4
      %s156 = scalar_lea.vmem %s0, %s155
      %s157 = smul.u32 32, %s14
      %p159 = scmp.eq.s32.totalorder %s14, 0
      // Predicated region
      $region33: #{graphconv_forward.2} parent=31 // pred_check
        %p160 = pneg %p159
      $region34: #{graphconv_forward.2} parent=31 // pred_check_branch
        %162 = sbr.rel (%p160) target = $region36
      $region35: #{graphconv_forward.2} parent=31 // pred_region
        %vm163 = vcmask 261120
        %164 = vst.msk [vmem:[#allocation2] sm:$0xff] %vm163, 0.0
        %165 = vst.msk [vmem:[#allocation2 + $0x8] sm:$0xff] %vm163, 0.0
        %166 = vst.msk [vmem:[#allocation2 + $0x10] sm:$0xff] %vm163, 0.0
        %167 = vst.msk [vmem:[#allocation2 + $0x18] sm:$0xff] %vm163, 0.0
      $region36: #{graphconv_forward.2} parent=31 // pred_fallthru
        _
      %v168 = vld [vmem:[%s156] sm:$0xf]
      %v169 = vld [vmem:[%s156 + $0x4] sm:$0xf]
      %v170 = vld [vmem:[%s156 + $0x8] sm:$0xf]
      %v171 = vld [vmem:[%s156 + $0xc] sm:$0xf]
      %v172 = vld [vmem:[%s156 + $0x10] sm:$0xf]
      %v173 = vld [vmem:[%s156 + $0x14] sm:$0xf]
      %v174 = vld [vmem:[%s156 + $0x18] sm:$0xf]
      %v175 = vld [vmem:[%s156 + $0x1c] sm:$0xf]
      %v176 = vld [vmem:[%s156 + $0x20] sm:$0xf]
      %v177 = vld [vmem:[%s156 + $0x24] sm:$0xf]
      %v178 = vld [vmem:[%s156 + $0x28] sm:$0xf]
      %v179 = vld [vmem:[%s156 + $0x2c] sm:$0xf]
      %v180 = vld [vmem:[%s156 + $0x30] sm:$0xf]
      %v181 = vld [vmem:[%s156 + $0x34] sm:$0xf]
      %v182 = vld [vmem:[%s156 + $0x38] sm:$0xf]
      %v183 = vld [vmem:[%s156 + $0x3c] sm:$0xf]
      %v184 = vld [vmem:[%s156 + $0x40] sm:$0xf]
      %v185 = vld [vmem:[%s156 + $0x44] sm:$0xf]
      %v186 = vld [vmem:[%s156 + $0x48] sm:$0xf]
      %v187 = vld [vmem:[%s156 + $0x4c] sm:$0xf]
      %v188 = vld [vmem:[%s156 + $0x50] sm:$0xf]
      %v189 = vld [vmem:[%s156 + $0x54] sm:$0xf]
      %v190 = vld [vmem:[%s156 + $0x58] sm:$0xf]
      %v191 = vld [vmem:[%s156 + $0x5c] sm:$0xf]
      %v192 = vld [vmem:[%s156 + $0x60] sm:$0xf]
      %v193 = vld [vmem:[%s156 + $0x64] sm:$0xf]
      %v194 = vld [vmem:[%s156 + $0x68] sm:$0xf]
      %v195 = vld [vmem:[%s156 + $0x6c] sm:$0xf]
      %v196 = vld [vmem:[%s156 + $0x70] sm:$0xf]
      %v197 = vld [vmem:[%s156 + $0x74] sm:$0xf]
      %v198 = vld [vmem:[%s156 + $0x78] sm:$0xf]
      %v199 = vld [vmem:[%s156 + $0x7c] sm:$0xf]
      %v200 = vld [vmem:[%s1] sm:$0xf]
      %v201 = vld [vmem:[%s1 + $0x4] sm:$0xf]
      %v202 = vld [vmem:[%s1 + $0x8] sm:$0xf]
      %v203 = vld [vmem:[%s1 + $0xc] sm:$0xf]
      %v204 = vld [vmem:[%s1 + $0x10] sm:$0xf]
      %v205 = vld [vmem:[%s1 + $0x14] sm:$0xf]
      %v206 = vld [vmem:[%s2] sm:$0x1]
      %v208 = vlaneseq
      %v209 = vshrl.u32 %v208, 7
      %v210 = vsub.s32 0, %v209
      %v211 = vrot.slane %v206, %v210
      %v245 = vunpack.c.l.b16 %v168
      %v246 = vunpack.c.l.b16 %v169
      %v247 = vunpack.c.l.b16 %v170
      %v248 = vunpack.c.l.b16 %v171
      %v249 = vunpack.c.l.b16 %v172
      %v250 = vunpack.c.l.b16 %v173
      %v251 = vunpack.c.l.b16 %v174
      %v252 = vunpack.c.l.b16 %v175
      %v253 = vunpack.c.l.b16 %v176
      %v254 = vunpack.c.l.b16 %v177
      %v255 = vunpack.c.l.b16 %v178
      %v256 = vunpack.c.l.b16 %v179
      %v257 = vunpack.c.l.b16 %v180
      %v258 = vunpack.c.l.b16 %v181
      %v259 = vunpack.c.l.b16 %v182
      %v260 = vunpack.c.l.b16 %v183
      %v261 = vunpack.c.l.b16 %v184
      %v262 = vunpack.c.l.b16 %v185
      %v263 = vunpack.c.l.b16 %v186
      %v264 = vunpack.c.l.b16 %v187
      %v265 = vunpack.c.l.b16 %v188
      %v266 = vunpack.c.l.b16 %v189
      %v267 = vunpack.c.l.b16 %v190
      %v268 = vunpack.c.l.b16 %v191
      %v269 = vunpack.c.l.b16 %v192
      %v270 = vunpack.c.l.b16 %v193
      %v271 = vunpack.c.l.b16 %v194
      %v272 = vunpack.c.l.b16 %v195
      %v273 = vunpack.c.l.b16 %v196
      %v274 = vunpack.c.l.b16 %v197
      %v275 = vunpack.c.l.b16 %v198
      %v276 = vunpack.c.l.b16 %v199
      %v277 = vpack.c.b16 %v246, %v245
      %v278 = vpack.c.b16 %v248, %v247
      %v279 = vpack.c.b16 %v250, %v249
      %v280 = vpack.c.b16 %v252, %v251
      %v281 = vpack.c.b16 %v254, %v253
      %v282 = vpack.c.b16 %v256, %v255
      %v283 = vpack.c.b16 %v258, %v257
      %v284 = vpack.c.b16 %v260, %v259
      %v285 = vpack.c.b16 %v262, %v261
      %v286 = vpack.c.b16 %v264, %v263
      %v287 = vpack.c.b16 %v266, %v265
      %v288 = vpack.c.b16 %v268, %v267
      %v289 = vpack.c.b16 %v270, %v269
      %v290 = vpack.c.b16 %v272, %v271
      %v291 = vpack.c.b16 %v274, %v273
      %v292 = vpack.c.b16 %v276, %v275
      %v299 = vunpack.c.l.b16 %v200
      %v300 = vunpack.c.l.b16 %v201
      %v301 = vunpack.c.l.b16 %v202
      %v302 = vunpack.c.l.b16 %v203
      %v303 = vunpack.c.l.b16 %v204
      %v304 = vunpack.c.l.b16 %v205
      %v305 = vpack.c.b16 %v300, %v299
      %v306 = vpack.c.b16 %v302, %v301
      %v307 = vpack.c.b16 %v304, %v303
      %vm311 = vcmask 392192
      %v313 = vsel %vm311, %v277, 0
      %v316 = vsel %vm311, %v278, 0
      %v319 = vsel %vm311, %v279, 0
      %v322 = vsel %vm311, %v280, 0
      %v325 = vsel %vm311, %v281, 0
      %v328 = vsel %vm311, %v282, 0
      %v331 = vsel %vm311, %v283, 0
      %v334 = vsel %vm311, %v284, 0
      %v337 = vsel %vm311, %v285, 0
      %v340 = vsel %vm311, %v286, 0
      %v343 = vsel %vm311, %v287, 0
      %v346 = vsel %vm311, %v288, 0
      %v349 = vsel %vm311, %v289, 0
      %v352 = vsel %vm311, %v290, 0
      %v355 = vsel %vm311, %v291, 0
      %v358 = vsel %vm311, %v292, 0
      %360 = vmatprep.subr.bf16.mxu0 0
      %361 = vmatpush1.bf16.msra.mxu0 %v305
      %362 = vmatprep.subr.bf16.mxu0 0
      %363 = vmatpush1.bf16.msra.mxu0 %v306
      %364 = vmatprep.subr.bf16.mxu0 0
      %365 = vmatpush1.bf16.msra.mxu0 %v307
      %366 = vmatprep.subr.bf16.mxu0 0
      %367 = vmatpush1.bf16.msra.mxu0 0
      %368 = vmatprep.subr.bf16.mxu0 0
      %369 = vmatpush1.bf16.msra.mxu0 0
      %370 = vmatprep.subr.bf16.mxu0 0
      %371 = vmatpush1.bf16.msra.mxu0 0
      %372 = vmatprep.subr.bf16.mxu0 0
      %373 = vmatpush1.bf16.msra.mxu0 0
      %374 = vmatprep.subr.bf16.mxu0 0
      %375 = vmatpush1.bf16.msra.mxu0 0
      %376 = vmatprep.subr.bf16.mxu0 0
      %377 = vmatpush1.bf16.msra.mxu0 0
      %378 = vmatprep.subr.bf16.mxu0 0
      %379 = vmatpush1.bf16.msra.mxu0 0
      %380 = vmatprep.subr.bf16.mxu0 0
      %381 = vmatpush1.bf16.msra.mxu0 0
      %382 = vmatprep.subr.bf16.mxu0 0
      %383 = vmatpush1.bf16.msra.mxu0 0
      %384 = vmatprep.subr.bf16.mxu0 0
      %385 = vmatpush1.bf16.msra.mxu0 0
      %386 = vmatprep.subr.bf16.mxu0 0
      %387 = vmatpush1.bf16.msra.mxu0 0
      %388 = vmatprep.subr.bf16.mxu0 0
      %389 = vmatpush1.bf16.msra.mxu0 0
      %390 = vmatprep.subr.bf16.mxu0 0
      %391 = vmatpush1.bf16.msra.mxu0 0
      %392 = vmatprep.mubr.bf16.mxu0 0
      %393 = vmatmul.mubr.bf16.gmra.mrb[0].mxu0 %v313
      %v394 = vpop.f32.mrb[0].mxu0
      %v395 = vadd.f32 %v211, %v394
      %v396 = vpop.f32.mrb[0].mxu0
      %v397 = vpop.f32.mrb[0].mxu0
      %v398 = vadd.f32 %v211, %v397
      %v399 = vpop.f32.mrb[0].mxu0
      %400 = vmatprep.mubr.bf16.mxu0 0
      %401 = vmatmul.mubr.bf16.gmra.mrb[0].mxu0 %v316
      %v402 = vpop.f32.mrb[0].mxu0
      %v403 = vadd.f32 %v211, %v402
      %v404 = vpop.f32.mrb[0].mxu0
      %v405 = vpop.f32.mrb[0].mxu0
      %v406 = vadd.f32 %v211, %v405
      %v407 = vpop.f32.mrb[0].mxu0
      %408 = vmatprep.mubr.bf16.mxu0 0
      %409 = vmatmul.mubr.bf16.gmra.mrb[0].mxu0 %v319
      %v410 = vpop.f32.mrb[0].mxu0
      %v411 = vadd.f32 %v211, %v410
      %v412 = vpop.f32.mrb[0].mxu0
      %v413 = vpop.f32.mrb[0].mxu0
      %v414 = vadd.f32 %v211, %v413
      %v415 = vpop.f32.mrb[0].mxu0
      %416 = vmatprep.mubr.bf16.mxu0 0
      %417 = vmatmul.mubr.bf16.gmra.mrb[0].mxu0 %v322
      %v418 = vpop.f32.mrb[0].mxu0
      %v419 = vadd.f32 %v211, %v418
      %v420 = vpop.f32.mrb[0].mxu0
      %v421 = vpop.f32.mrb[0].mxu0
      %v422 = vadd.f32 %v211, %v421
      %v423 = vpop.f32.mrb[0].mxu0
      %424 = vmatprep.mubr.bf16.mxu0 0
      %425 = vmatmul.mubr.bf16.gmra.mrb[0].mxu0 %v325
      %v426 = vpop.f32.mrb[0].mxu0
      %v427 = vadd.f32 %v211, %v426
      %v428 = vpop.f32.mrb[0].mxu0
      %v429 = vpop.f32.mrb[0].mxu0
      %v430 = vadd.f32 %v211, %v429
      %v431 = vpop.f32.mrb[0].mxu0
      %432 = vmatprep.mubr.bf16.mxu0 0
      %433 = vmatmul.mubr.bf16.gmra.mrb[0].mxu0 %v328
      %v434 = vpop.f32.mrb[0].mxu0
      %v435 = vadd.f32 %v211, %v434
      %v436 = vpop.f32.mrb[0].mxu0
      %v437 = vpop.f32.mrb[0].mxu0
      %v438 = vadd.f32 %v211, %v437
      %v439 = vpop.f32.mrb[0].mxu0
      %440 = vmatprep.mubr.bf16.mxu0 0
      %441 = vmatmul.mubr.bf16.gmra.mrb[0].mxu0 %v331
      %v442 = vpop.f32.mrb[0].mxu0
      %v443 = vadd.f32 %v211, %v442
      %v444 = vpop.f32.mrb[0].mxu0
      %v445 = vpop.f32.mrb[0].mxu0
      %v446 = vadd.f32 %v211, %v445
      %v447 = vpop.f32.mrb[0].mxu0
      %448 = vmatprep.mubr.bf16.mxu0 0
      %449 = vmatmul.mubr.bf16.gmra.mrb[0].mxu0 %v334
      %v450 = vpop.f32.mrb[0].mxu0
      %v451 = vadd.f32 %v211, %v450
      %v452 = vpop.f32.mrb[0].mxu0
      %v453 = vpop.f32.mrb[0].mxu0
      %v454 = vadd.f32 %v211, %v453
      %v455 = vpop.f32.mrb[0].mxu0
      %456 = vmatprep.mubr.bf16.mxu0 0
      %457 = vmatmul.mubr.bf16.gmra.mrb[0].mxu0 %v337
      %v458 = vpop.f32.mrb[0].mxu0
      %v459 = vadd.f32 %v211, %v458
      %v460 = vpop.f32.mrb[0].mxu0
      %v461 = vpop.f32.mrb[0].mxu0
      %v462 = vadd.f32 %v211, %v461
      %v463 = vpop.f32.mrb[0].mxu0
      %464 = vmatprep.mubr.bf16.mxu0 0
      %465 = vmatmul.mubr.bf16.gmra.mrb[0].mxu0 %v340
      %v466 = vpop.f32.mrb[0].mxu0
      %v467 = vadd.f32 %v211, %v466
      %v468 = vpop.f32.mrb[0].mxu0
      %v469 = vpop.f32.mrb[0].mxu0
      %v470 = vadd.f32 %v211, %v469
      %v471 = vpop.f32.mrb[0].mxu0
      %472 = vmatprep.mubr.bf16.mxu0 0
      %473 = vmatmul.mubr.bf16.gmra.mrb[0].mxu0 %v343
      %v474 = vpop.f32.mrb[0].mxu0
      %v475 = vadd.f32 %v211, %v474
      %v476 = vpop.f32.mrb[0].mxu0
      %v477 = vpop.f32.mrb[0].mxu0
      %v478 = vadd.f32 %v211, %v477
      %v479 = vpop.f32.mrb[0].mxu0
      %480 = vmatprep.mubr.bf16.mxu0 0
      %481 = vmatmul.mubr.bf16.gmra.mrb[0].mxu0 %v346
      %v482 = vpop.f32.mrb[0].mxu0
      %v483 = vadd.f32 %v211, %v482
      %v484 = vpop.f32.mrb[0].mxu0
      %v485 = vpop.f32.mrb[0].mxu0
      %v486 = vadd.f32 %v211, %v485
      %v487 = vpop.f32.mrb[0].mxu0
      %488 = vmatprep.mubr.bf16.mxu0 0
      %489 = vmatmul.mubr.bf16.gmra.mrb[0].mxu0 %v349
      %v490 = vpop.f32.mrb[0].mxu0
      %v491 = vadd.f32 %v211, %v490
      %v492 = vpop.f32.mrb[0].mxu0
      %v493 = vpop.f32.mrb[0].mxu0
      %v494 = vadd.f32 %v211, %v493
      %v495 = vpop.f32.mrb[0].mxu0
      %496 = vmatprep.mubr.bf16.mxu0 0
      %497 = vmatmul.mubr.bf16.gmra.mrb[0].mxu0 %v352
      %v498 = vpop.f32.mrb[0].mxu0
      %v499 = vadd.f32 %v211, %v498
      %v500 = vpop.f32.mrb[0].mxu0
      %v501 = vpop.f32.mrb[0].mxu0
      %v502 = vadd.f32 %v211, %v501
      %v503 = vpop.f32.mrb[0].mxu0
      %504 = vmatprep.mubr.bf16.mxu0 0
      %505 = vmatmul.mubr.bf16.gmra.mrb[0].mxu0 %v355
      %v506 = vpop.f32.mrb[0].mxu0
      %v507 = vadd.f32 %v211, %v506
      %v508 = vpop.f32.mrb[0].mxu0
      %v509 = vpop.f32.mrb[0].mxu0
      %v510 = vadd.f32 %v211, %v509
      %v511 = vpop.f32.mrb[0].mxu0
      %512 = vmatprep.mubr.bf16.mxu0 0
      %513 = vmatmul.mubr.bf16.gmra.mrb[0].mxu0 %v358
      %v514 = vpop.f32.mrb[0].mxu0
      %v515 = vadd.f32 %v211, %v514
      %v516 = vpop.f32.mrb[0].mxu0
      %v517 = vpop.f32.mrb[0].mxu0
      %v518 = vadd.f32 %v211, %v517
      %v519 = vpop.f32.mrb[0].mxu0
      %520 = vdwg.mxu0
      %s521 = smul.u32 %s14, 256
      %v522 = vlaneseq
      %v523 = vshrl.u32 %v522, 7
      %v524 = vadd.s32 %v523, 8
      %v525 = vadd.s32 %v523, 16
      %v526 = vadd.s32 %v523, 24
      %v527 = vadd.s32 %v523, 32
      %v528 = vadd.s32 %v523, 40
      %v529 = vadd.s32 %v523, 48
      %v530 = vadd.s32 %v523, 56
      %v531 = vadd.s32 %v523, 64
      %v532 = vadd.s32 %v523, 72
      %v533 = vadd.s32 %v523, 80
      %v534 = vadd.s32 %v523, 88
      %v535 = vadd.s32 %v523, 96
      %v536 = vadd.s32 %v523, 104
      %v537 = vadd.s32 %v523, 112
      %v538 = vadd.s32 %v523, 120
      %v539 = vadd.s32 %v523, 128
      %v540 = vadd.s32 %v523, 136
      %v541 = vadd.s32 %v523, 144
      %v542 = vadd.s32 %v523, 152
      %v543 = vadd.s32 %v523, 160
      %v544 = vadd.s32 %v523, 168
      %v545 = vadd.s32 %v523, 176
      %v546 = vadd.s32 %v523, 184
      %v547 = vadd.s32 %v523, 192
      %v548 = vadd.s32 %v523, 200
      %v549 = vadd.s32 %v523, 208
      %v550 = vadd.s32 %v523, 216
      %v551 = vadd.s32 %v523, 224
      %v552 = vadd.s32 %v523, 232
      %v553 = vadd.s32 %v523, 240
      %v554 = vadd.s32 %v523, 248
      %v555 = vstv %s521
      %v556 = vadd.s32 %v555, %v523
      %v557 = vadd.s32 %v555, %v524
      %v558 = vadd.s32 %v555, %v525
      %v559 = vadd.s32 %v555, %v526
      %v560 = vadd.s32 %v555, %v527
      %v561 = vadd.s32 %v555, %v528
      %v562 = vadd.s32 %v555, %v529
      %v563 = vadd.s32 %v555, %v530
      %v564 = vadd.s32 %v555, %v531
      %v565 = vadd.s32 %v555, %v532
      %v566 = vadd.s32 %v555, %v533
      %v567 = vadd.s32 %v555, %v534
      %v568 = vadd.s32 %v555, %v535
      %v569 = vadd.s32 %v555, %v536
      %v570 = vadd.s32 %v555, %v537
      %v571 = vadd.s32 %v555, %v538
      %v572 = vadd.s32 %v555, %v539
      %v573 = vadd.s32 %v555, %v540
      %v574 = vadd.s32 %v555, %v541
      %v575 = vadd.s32 %v555, %v542
      %v576 = vadd.s32 %v555, %v543
      %v577 = vadd.s32 %v555, %v544
      %v578 = vadd.s32 %v555, %v545
      %v579 = vadd.s32 %v555, %v546
      %v580 = vadd.s32 %v555, %v547
      %v581 = vadd.s32 %v555, %v548
      %v582 = vadd.s32 %v555, %v549
      %v583 = vadd.s32 %v555, %v550
      %v584 = vadd.s32 %v555, %v551
      %v585 = vadd.s32 %v555, %v552
      %v586 = vadd.s32 %v555, %v553
      %v587 = vadd.s32 %v555, %v554
      %vm588 = vcmp.lt.s32.totalorder %v556, 384
      %vm589 = vcmp.lt.s32.totalorder %v557, 384
      %vm590 = vcmp.lt.s32.totalorder %v558, 384
      %vm591 = vcmp.lt.s32.totalorder %v559, 384
      %vm592 = vcmp.lt.s32.totalorder %v560, 384
      %vm593 = vcmp.lt.s32.totalorder %v561, 384
      %vm594 = vcmp.lt.s32.totalorder %v562, 384
      %vm595 = vcmp.lt.s32.totalorder %v563, 384
      %vm596 = vcmp.lt.s32.totalorder %v564, 384
      %vm597 = vcmp.lt.s32.totalorder %v565, 384
      %vm598 = vcmp.lt.s32.totalorder %v566, 384
      %vm599 = vcmp.lt.s32.totalorder %v567, 384
      %vm600 = vcmp.lt.s32.totalorder %v568, 384
      %vm601 = vcmp.lt.s32.totalorder %v569, 384
      %vm602 = vcmp.lt.s32.totalorder %v570, 384
      %vm603 = vcmp.lt.s32.totalorder %v571, 384
      %vm604 = vcmp.lt.s32.totalorder %v572, 384
      %vm605 = vcmp.lt.s32.totalorder %v573, 384
      %vm606 = vcmp.lt.s32.totalorder %v574, 384
      %vm607 = vcmp.lt.s32.totalorder %v575, 384
      %vm608 = vcmp.lt.s32.totalorder %v576, 384
      %vm609 = vcmp.lt.s32.totalorder %v577, 384
      %vm610 = vcmp.lt.s32.totalorder %v578, 384
      %vm611 = vcmp.lt.s32.totalorder %v579, 384
      %vm612 = vcmp.lt.s32.totalorder %v580, 384
      %vm613 = vcmp.lt.s32.totalorder %v581, 384
      %vm614 = vcmp.lt.s32.totalorder %v582, 384
      %vm615 = vcmp.lt.s32.totalorder %v583, 384
      %vm616 = vcmp.lt.s32.totalorder %v584, 384
      %vm617 = vcmp.lt.s32.totalorder %v585, 384
      %vm618 = vcmp.lt.s32.totalorder %v586, 384
      %vm619 = vcmp.lt.s32.totalorder %v587, 384
      %v620 = vsel %vm588, 1, 0
      %v621 = vsel %vm589, 1, 0
      %v622 = vsel %vm590, 1, 0
      %v623 = vsel %vm591, 1, 0
      %v624 = vsel %vm592, 1, 0
      %v625 = vsel %vm593, 1, 0
      %v626 = vsel %vm594, 1, 0
      %v627 = vsel %vm595, 1, 0
      %v628 = vsel %vm596, 1, 0
      %v629 = vsel %vm597, 1, 0
      %v630 = vsel %vm598, 1, 0
      %v631 = vsel %vm599, 1, 0
      %v632 = vsel %vm600, 1, 0
      %v633 = vsel %vm601, 1, 0
      %v634 = vsel %vm602, 1, 0
      %v635 = vsel %vm603, 1, 0
      %v636 = vsel %vm604, 1, 0
      %v637 = vsel %vm605, 1, 0
      %v638 = vsel %vm606, 1, 0
      %v639 = vsel %vm607, 1, 0
      %v640 = vsel %vm608, 1, 0
      %v641 = vsel %vm609, 1, 0
      %v642 = vsel %vm610, 1, 0
      %v643 = vsel %vm611, 1, 0
      %v644 = vsel %vm612, 1, 0
      %v645 = vsel %vm613, 1, 0
      %v646 = vsel %vm614, 1, 0
      %v647 = vsel %vm615, 1, 0
      %v648 = vsel %vm616, 1, 0
      %v649 = vsel %vm617, 1, 0
      %v650 = vsel %vm618, 1, 0
      %v651 = vsel %vm619, 1, 0
      %vm652 = vcmp.eq.s32.totalorder %v620, 1
      %vm653 = vcmp.eq.s32.totalorder %v621, 1
      %vm654 = vcmp.eq.s32.totalorder %v622, 1
      %vm655 = vcmp.eq.s32.totalorder %v623, 1
      %vm656 = vcmp.eq.s32.totalorder %v624, 1
      %vm657 = vcmp.eq.s32.totalorder %v625, 1
      %vm658 = vcmp.eq.s32.totalorder %v626, 1
      %vm659 = vcmp.eq.s32.totalorder %v627, 1
      %vm660 = vcmp.eq.s32.totalorder %v628, 1
      %vm661 = vcmp.eq.s32.totalorder %v629, 1
      %vm662 = vcmp.eq.s32.totalorder %v630, 1
      %vm663 = vcmp.eq.s32.totalorder %v631, 1
      %vm664 = vcmp.eq.s32.totalorder %v632, 1
      %vm665 = vcmp.eq.s32.totalorder %v633, 1
      %vm666 = vcmp.eq.s32.totalorder %v634, 1
      %vm667 = vcmp.eq.s32.totalorder %v635, 1
      %vm668 = vcmp.eq.s32.totalorder %v636, 1
      %vm669 = vcmp.eq.s32.totalorder %v637, 1
      %vm670 = vcmp.eq.s32.totalorder %v638, 1
      %vm671 = vcmp.eq.s32.totalorder %v639, 1
      %vm672 = vcmp.eq.s32.totalorder %v640, 1
      %vm673 = vcmp.eq.s32.totalorder %v641, 1
      %vm674 = vcmp.eq.s32.totalorder %v642, 1
      %vm675 = vcmp.eq.s32.totalorder %v643, 1
      %vm676 = vcmp.eq.s32.totalorder %v644, 1
      %vm677 = vcmp.eq.s32.totalorder %v645, 1
      %vm678 = vcmp.eq.s32.totalorder %v646, 1
      %vm679 = vcmp.eq.s32.totalorder %v647, 1
      %vm680 = vcmp.eq.s32.totalorder %v648, 1
      %vm681 = vcmp.eq.s32.totalorder %v649, 1
      %vm682 = vcmp.eq.s32.totalorder %v650, 1
      %vm683 = vcmp.eq.s32.totalorder %v651, 1
      %v684 = vsel %vm652, %v395, 0.0
      %v685 = vsel %vm653, %v398, 0.0
      %v686 = vsel %vm654, %v403, 0.0
      %v687 = vsel %vm655, %v406, 0.0
      %v688 = vsel %vm656, %v411, 0.0
      %v689 = vsel %vm657, %v414, 0.0
      %v690 = vsel %vm658, %v419, 0.0
      %v691 = vsel %vm659, %v422, 0.0
      %v692 = vsel %vm660, %v427, 0.0
      %v693 = vsel %vm661, %v430, 0.0
      %v694 = vsel %vm662, %v435, 0.0
      %v695 = vsel %vm663, %v438, 0.0
      %v696 = vsel %vm664, %v443, 0.0
      %v697 = vsel %vm665, %v446, 0.0
      %v698 = vsel %vm666, %v451, 0.0
      %v699 = vsel %vm667, %v454, 0.0
      %v700 = vsel %vm668, %v459, 0.0
      %v701 = vsel %vm669, %v462, 0.0
      %v702 = vsel %vm670, %v467, 0.0
      %v703 = vsel %vm671, %v470, 0.0
      %v704 = vsel %vm672, %v475, 0.0
      %v705 = vsel %vm673, %v478, 0.0
      %v706 = vsel %vm674, %v483, 0.0
      %v707 = vsel %vm675, %v486, 0.0
      %v708 = vsel %vm676, %v491, 0.0
      %v709 = vsel %vm677, %v494, 0.0
      %v710 = vsel %vm678, %v499, 0.0
      %v711 = vsel %vm679, %v502, 0.0
      %v712 = vsel %vm680, %v507, 0.0
      %v713 = vsel %vm681, %v510, 0.0
      %v714 = vsel %vm682, %v515, 0.0
      %v715 = vsel %vm683, %v518, 0.0
      %v716 = vpack.c.bf16 %v685, %v684
      %v717 = vpack.c.bf16 %v687, %v686
      %v718 = vpack.c.bf16 %v689, %v688
      %v719 = vpack.c.bf16 %v691, %v690
      %v720 = vpack.c.bf16 %v693, %v692
      %v721 = vpack.c.bf16 %v695, %v694
      %v722 = vpack.c.bf16 %v697, %v696
      %v723 = vpack.c.bf16 %v699, %v698
      %v724 = vpack.c.bf16 %v701, %v700
      %v725 = vpack.c.bf16 %v703, %v702
      %v726 = vpack.c.bf16 %v705, %v704
      %v727 = vpack.c.bf16 %v707, %v706
      %v728 = vpack.c.bf16 %v709, %v708
      %v729 = vpack.c.bf16 %v711, %v710
      %v730 = vpack.c.bf16 %v713, %v712
      %v731 = vpack.c.bf16 %v715, %v714
      %v732 = vld [vmem:[#allocation2] sm:$0xff]
      %v733 = vld [vmem:[#allocation2 + $0x8] sm:$0xff]
      %v734 = vld [vmem:[#allocation2 + $0x10] sm:$0xff]
      %v735 = vld [vmem:[#allocation2 + $0x18] sm:$0xff]
      %736 = vxpose.xlu0.c.b16.start [1/8] %v716, 128
      %737 = vxpose.xlu0.c.b16.cont [2/8] %v717, 128
      %738 = vxpose.xlu0.c.b16.cont [3/8] %v718, 128
      %739 = vxpose.xlu0.c.b16.cont [4/8] %v719, 128
      %740 = vxpose.xlu0.c.b16.cont [5/8] %v720, 128
      %741 = vxpose.xlu0.c.b16.cont [6/8] %v721, 128
      %742 = vxpose.xlu0.c.b16.cont [7/8] %v722, 128
      %743 = vxpose.xlu0.c.b16.end [8/8] %v723, 128
      %v744 = vpop.trf.xlu0
      %v745 = vpop.trf.xlu0
      %v746 = vpop.trf.xlu0
      %v747 = vpop.trf.xlu0
      %v748 = vpop.trf.xlu0
      %v749 = vpop.trf.xlu0
      %v750 = vpop.trf.xlu0
      %v751 = vpop.trf.xlu0
      %752 = vxpose.xlu0.c.b16.start [1/8] %v724, 128
      %753 = vxpose.xlu0.c.b16.cont [2/8] %v725, 128
      %754 = vxpose.xlu0.c.b16.cont [3/8] %v726, 128
      %755 = vxpose.xlu0.c.b16.cont [4/8] %v727, 128
      %756 = vxpose.xlu0.c.b16.cont [5/8] %v728, 128
      %757 = vxpose.xlu0.c.b16.cont [6/8] %v729, 128
      %758 = vxpose.xlu0.c.b16.cont [7/8] %v730, 128
      %759 = vxpose.xlu0.c.b16.end [8/8] %v731, 128
      %v760 = vpop.trf.xlu0
      %v761 = vpop.trf.xlu0
      %v762 = vpop.trf.xlu0
      %v763 = vpop.trf.xlu0
      %v764 = vpop.trf.xlu0
      %v765 = vpop.trf.xlu0
      %v766 = vpop.trf.xlu0
      %v767 = vpop.trf.xlu0
      %768 = vmatprep.subr.bf16.mxu0 0
      %769 = vmatpush1.bf16.msra.mxu0 %v716
      %770 = vmatprep.subr.bf16.mxu0 0
      %771 = vmatpush1.bf16.msra.mxu0 %v717
      %772 = vmatprep.subr.bf16.mxu0 0
      %773 = vmatpush1.bf16.msra.mxu0 %v718
      %774 = vmatprep.subr.bf16.mxu0 0
      %775 = vmatpush1.bf16.msra.mxu0 %v719
      %776 = vmatprep.subr.bf16.mxu0 0
      %777 = vmatpush1.bf16.msra.mxu0 %v720
      %778 = vmatprep.subr.bf16.mxu0 0
      %779 = vmatpush1.bf16.msra.mxu0 %v721
      %780 = vmatprep.subr.bf16.mxu0 0
      %781 = vmatpush1.bf16.msra.mxu0 %v722
      %782 = vmatprep.subr.bf16.mxu0 0
      %783 = vmatpush1.bf16.msra.mxu0 %v723
      %784 = vmatprep.subr.bf16.mxu0 0
      %785 = vmatpush1.bf16.msra.mxu0 %v724
      %786 = vmatprep.subr.bf16.mxu0 0
      %787 = vmatpush1.bf16.msra.mxu0 %v725
      %788 = vmatprep.subr.bf16.mxu0 0
      %789 = vmatpush1.bf16.msra.mxu0 %v726
      %790 = vmatprep.subr.bf16.mxu0 0
      %791 = vmatpush1.bf16.msra.mxu0 %v727
      %792 = vmatprep.subr.bf16.mxu0 0
      %793 = vmatpush1.bf16.msra.mxu0 %v728
      %794 = vmatprep.subr.bf16.mxu0 0
      %795 = vmatpush1.bf16.msra.mxu0 %v729
      %796 = vmatprep.subr.bf16.mxu0 0
      %797 = vmatpush1.bf16.msra.mxu0 %v730
      %798 = vmatprep.subr.bf16.mxu0 0
      %799 = vmatpush1.bf16.msra.mxu0 %v731
      %800 = vmatprep.mubr.bf16.mxu0 %v760
      %801 = vmatmul.mubr.bf16.gmra.mrb[0].mxu0 %v744
      %v802 = vpop.f32.mrb[0].mxu0
      %v803 = vadd.f32 0.0, %v802
      %v804 = vpop.f32.mrb[0].mxu0
      %v805 = vpop.f32.mrb[0].mxu0
      %v806 = vadd.f32 0.0, %v805
      %v807 = vpop.f32.mrb[0].mxu0
      %808 = vmatprep.mubr.bf16.mxu0 %v761
      %809 = vmatmul.mubr.bf16.gmra.mrb[0].mxu0 %v745
      %v810 = vpop.f32.mrb[0].mxu0
      %v811 = vadd.f32 0.0, %v810
      %v812 = vpop.f32.mrb[0].mxu0
      %v813 = vpop.f32.mrb[0].mxu0
      %v814 = vadd.f32 0.0, %v813
      %v815 = vpop.f32.mrb[0].mxu0
      %816 = vdwg.mxu0
      %v817 = vadd.f32 %v732, %v803
      %v818 = vadd.f32 %v733, %v806
      %v819 = vadd.f32 %v734, %v811
      %v820 = vadd.f32 %v735, %v814
      %vm821 = vcmask 261120
      %822 = vst.msk [vmem:[#allocation2] sm:$0xff] %vm821, %v817
      %823 = vst.msk [vmem:[#allocation2 + $0x8] sm:$0xff] %vm821, %v818
      %824 = vst.msk [vmem:[#allocation2 + $0x10] sm:$0xff] %vm821, %v819
      %825 = vst.msk [vmem:[#allocation2 + $0x18] sm:$0xff] %vm821, %v820
      %p826 = scmp.eq.s32.totalorder %s14, 1
      // Predicated region
      $region37: #{graphconv_forward.2} parent=31 // pred_check
        %p827 = pneg %p826
      $region38: #{graphconv_forward.2} parent=31 // pred_check_branch
        %829 = sbr.rel (%p827) target = $region40
      $region39: #{graphconv_forward.2} parent=31 // pred_region
        %v830 = vld [vmem:[#allocation2] sm:$0xff]
        %v831 = vld [vmem:[#allocation2 + $0x8] sm:$0xff]
        %v832 = vld [vmem:[#allocation2 + $0x10] sm:$0xff]
        %v833 = vld [vmem:[#allocation2 + $0x18] sm:$0xff]
        %834 = vst.msk [vmem:[%s3] sm:$0xff] %vm821, %v830
        %835 = vst.msk [vmem:[%s3 + $0x8] sm:$0xff] %vm821, %v831
        %836 = vst.msk [vmem:[%s3 + $0x10] sm:$0xff] %vm821, %v832
        %837 = vst.msk [vmem:[%s3 + $0x18] sm:$0xff] %vm821, %v833
      $region40: #{graphconv_forward.2} parent=31 // pred_fallthru
        _
      // Predicated region
      $region41: #{graphconv_forward.2} parent=31 // pred_check
        %p838 = pneg %p95
      $region42: #{graphconv_forward.2} parent=31 // pred_check_branch
        %840 = sbr.rel (%p838) target = $region44
      $region43: #{graphconv_forward.2} parent=31 // pred_region
        _
      $region44: #{graphconv_forward.2} parent=31 // pred_fallthru
        _
      // Predicated region
      $region45: #{graphconv_forward.2} parent=31 // pred_check
        %p841 = pneg %p95
      $region46: #{graphconv_forward.2} parent=31 // pred_check_branch
        %843 = sbr.rel (%p841) target = $region48
      $region47: #{graphconv_forward.2} parent=31 // pred_region
        _
      $region48: #{graphconv_forward.2} parent=31 // pred_fallthru
        _
    $region32: #{graphconv_forward.2} parent=5 // pred_fallthru
      _
    %p844 = scmp.le.s32.totalorder 2, %s9
    // Predicated region
    $region49: #{graphconv_forward.2} parent=5 // pred_check
      %p845 = pneg %p844
    $region50: #{graphconv_forward.2} parent=5 // pred_check_branch
      %847 = sbr.rel (%p845) target = $region52
    $region51: #{graphconv_forward.2} parent=5 // pred_region
      %s848 = ssub.s32 %s9, 2
    $region52: #{graphconv_forward.2} parent=5 // pred_fallthru
      _
  $region6: #{graphconv_forward.2} parent=0 // loop_footer
    %s13 = sadd.s32 1, %s9
  $region7: #{graphconv_forward.2} parent=0 // loop_footer_branch
    %8 = sbr.rel target = $region3
  $region8: #{graphconv_forward.2} parent=0 // loop_exit
    _

</llo_original>
